<compile_context>
chip_gen: v7x
topology: tpu7x:2x2x1
jax: 0.10.0
libtpu: 0.0.40
codegen_flags: <defaults>
</compile_context>

<pallas_src>
import jax
import jax.numpy as jnp
from jax.experimental import pallas as pl
from jax.experimental.pallas import tpu as pltpu


def _silu(x):
    return x * jax.nn.sigmoid(x)


def _cparams(*dim_sems, vmem_limit_bytes=None):
    return pltpu.CompilerParams(dimension_semantics=dim_sems,
                                vmem_limit_bytes=vmem_limit_bytes)


def _shift_rows(a, k):
    """result[i, :] == a[i + k, :] for i < len(a) - k; wrapped tail rows are never read."""
    if k == 0:
        return a
    return jnp.roll(a, -k, axis=0)


# ---------------------------------------------------------------------------
# Kernel 1: CSP stem -- conv1 & conv2 (1x1 conv + folded BN + SiLU) fused.
# ---------------------------------------------------------------------------
def _stem_kernel(x_ref, w1_ref, b1_ref, w2_ref, b2_ref, o1_ref, o2_ref):
    f32 = jnp.float32
    x = x_ref[...]
    y1 = jnp.dot(x, w1_ref[...], preferred_element_type=f32) + b1_ref[...].astype(f32)
    y2 = jnp.dot(x, w2_ref[...], preferred_element_type=f32) + b2_ref[...].astype(f32)
    o1_ref[...] = _silu(y1).astype(o1_ref.dtype)
    o2_ref[...] = _silu(y2).astype(o2_ref.dtype)


def csp_stem(x_nhwc, w1, b1, w2, b2, tm=1024, vmem_limit_bytes=None):
    N, H, W, Cin = x_nhwc.shape
    hid = w1.shape[1]
    M = N * H * W
    tm = M if M <= tm else tm          # 1024 is a multiple of 8; a partial tail tile is fine
    xm = x_nhwc.reshape(M, Cin)
    x1, x2 = pl.pallas_call(
        _stem_kernel,
        out_shape=(jax.ShapeDtypeStruct((M, hid), x_nhwc.dtype),
                   jax.ShapeDtypeStruct((M, hid), x_nhwc.dtype)),
        grid_spec=pltpu.PrefetchScalarGridSpec(
            num_scalar_prefetch=0,
            grid=(pl.cdiv(M, tm),),
            in_specs=[
                pl.BlockSpec((tm, Cin), lambda i: (i, 0)),
                pl.BlockSpec((Cin, hid), lambda i: (0, 0)),
                pl.BlockSpec((1, hid), lambda i: (0, 0)),
                pl.BlockSpec((Cin, hid), lambda i: (0, 0)),
                pl.BlockSpec((1, hid), lambda i: (0, 0)),
            ],
            out_specs=(pl.BlockSpec((tm, hid), lambda i: (i, 0)),
                       pl.BlockSpec((tm, hid), lambda i: (i, 0))),
        ),
        compiler_params=_cparams("parallel", vmem_limit_bytes=vmem_limit_bytes),
    )(xm, w1, b1.reshape(1, hid), w2, b2.reshape(1, hid))
    return x1.reshape(N, H, W, hid), x2.reshape(N, H, W, hid)


# ---------------------------------------------------------------------------
# Kernel 2: fused Bottleneck body.
#   x1 strip -> 1x1 conv+BN+SiLU -> 3x3 conv+BN+SiLU -> (+ residual) -> out strip
# ---------------------------------------------------------------------------
def _make_bottleneck_kernel(H, W, Wp, th, use_add):
    def kernel(xc_ref, xh_ref, w1_ref, b1_ref, w2_ref, b2_ref, o_ref):
        f32 = jnp.float32
        C = w1_ref.shape[0]
        h = pl.program_id(1)

        # Assemble the haloed (th+2)-row strip of the spatially padded input.
        xc = xc_ref[...].reshape(th * Wp, C)           # padded rows [h*th, h*th+th)
        xh = xh_ref[...].reshape(2 * Wp, C)            # padded rows [h*th+th, h*th+th+2)
        xs = jnp.concatenate([xc, xh], axis=0)         # ((th+2)*Wp, C)

        # Bottleneck conv1: 1x1 conv (BN folded into w1) + SiLU.
        y = _silu(jnp.dot(xs, w1_ref[...], preferred_element_type=f32)
                  + b1_ref[...].astype(f32))

        # The 3x3 conv zero-pads *its own* input, so y must be exactly zero on the
        # spatial padding positions (otherwise silu(bias) would leak in from the pad).
        y3 = y.reshape(th + 2, Wp, C)
        row = jax.lax.broadcasted_iota(jnp.int32, (th + 2, Wp, C), 0) + h * th
        col = jax.lax.broadcasted_iota(jnp.int32, (th + 2, Wp, C), 1)
        keep = (row >= 1) & (row <= H) & (col >= 1) & (col <= W)
        y = jnp.where(keep, y3, 0.0).reshape((th + 2) * Wp, C).astype(xs.dtype)

        # Bottleneck conv2: 3x3 conv as 9 tap matmuls.  Row (ky) offsets are Wp-aligned
        # slices (free views since Wp % 8 == 0); only the two column (kx) offsets need a
        # one/two-row shift of the flattened strip.
        ys = (y, _shift_rows(y, 1), _shift_rows(y, 2))
        acc = None
        for ky in range(3):
            for kx in range(3):
                tap = jnp.dot(ys[kx][ky * Wp:(ky + th) * Wp], w2_ref[3 * ky + kx],
                              preferred_element_type=f32)
                acc = tap if acc is None else acc + tap
        z = _silu(acc + b2_ref[...].astype(f32))

        if use_add:  # residual taken straight from the resident strip (no extra HBM read)
            z = z + _shift_rows(xs, Wp + 1)[:th * Wp].astype(f32)

        # Drop the padded columns and store the lane-dense (th, W, C) block.
        o_ref[...] = z.reshape(th, Wp, C)[:, :W, :].astype(o_ref.dtype)

    return kernel


def _pick_th(H, target=64):
    best = None
    for d in range(2, min(H, target) + 1, 2):
        if H % d == 0:
            best = d
    return best if best is not None else H


def bottleneck_fused(x1, w1m, b1, w9m, b2, use_add, th_target=64, vmem_limit_bytes=None):
    """Fused CSP Bottleneck: 1x1 conv+BN+SiLU -> 3x3 conv+BN+SiLU -> optional +x1."""
    N, H, W, C = x1.shape
    if H % 2:
        # TODO(synk): odd feature-map heights would need an element-indexed halo block.
        raise ValueError("bottleneck_fused requires an even feature-map height")
    th = _pick_th(H, th_target)                       # row-strip height (divides H, even)
    nh = H // th
    Wp = ((W + 2 + 7) // 8) * 8                       # sublane-aligned padded width
    xpad = jnp.pad(x1, ((0, 0), (1, 1), (1, Wp - W - 1), (0, 0)))
    kernel = _make_bottleneck_kernel(H, W, Wp, th, use_add)
    return pl.pallas_call(
        kernel,
        out_shape=jax.ShapeDtypeStruct((N, H, W, C), x1.dtype),
        grid_spec=pltpu.PrefetchScalarGridSpec(
            num_scalar_prefetch=0,
            grid=(N, nh),
            in_specs=[
                # Current th-row strip of the padded input ...
                pl.BlockSpec((pl.Squeezed(), th, Wp, C), lambda b, h: (b, h, 0, 0)),
                # ... plus its 2-row halo, read through a second BlockSpec on the SAME
                # array so everything stays on the automatic double-buffered pipeline.
                pl.BlockSpec((pl.Squeezed(), 2, Wp, C),
                             lambda b, h: (b, (h + 1) * (th // 2), 0, 0)),
                pl.BlockSpec((C, C), lambda b, h: (0, 0)),       # 1x1 weights (BN folded)
                pl.BlockSpec((1, C), lambda b, h: (0, 0)),       # 1x1 bias
                pl.BlockSpec((9, C, C), lambda b, h: (0, 0, 0)),  # 3x3 weights (BN folded)
                pl.BlockSpec((1, C), lambda b, h: (0, 0)),       # 3x3 bias
            ],
            out_specs=pl.BlockSpec((pl.Squeezed(), th, W, C), lambda b, h: (b, h, 0, 0)),
        ),
        compiler_params=_cparams("parallel", "parallel",
                                 vmem_limit_bytes=vmem_limit_bytes),
    )(xpad, xpad, w1m, b1.reshape(1, C), w9m, b2.reshape(1, C))


# ---------------------------------------------------------------------------
# Kernel 3: CSP merge -- conv3 on (x1 | x2) with split weights (no HBM concat).
# ---------------------------------------------------------------------------
def _merge_kernel(x1_ref, x2_ref, wa_ref, wb_ref, bias_ref, o_ref):
    f32 = jnp.float32
    acc = jnp.dot(x1_ref[...], wa_ref[...], preferred_element_type=f32)
    acc = acc + jnp.dot(x2_ref[...], wb_ref[...], preferred_element_type=f32)
    o_ref[...] = _silu(acc + bias_ref[...].astype(f32)).astype(o_ref.dtype)


def csp_merge(x1, x2, wa, wb, bias, tm=1024, vmem_limit_bytes=None):
    N, H, W, hid = x1.shape
    Cout = wa.shape[1]
    M = N * H * W
    tm = M if M <= tm else tm
    out = pl.pallas_call(
        _merge_kernel,
        out_shape=jax.ShapeDtypeStruct((M, Cout), x1.dtype),
        grid_spec=pltpu.PrefetchScalarGridSpec(
            num_scalar_prefetch=0,
            grid=(pl.cdiv(M, tm),),
            in_specs=[
                pl.BlockSpec((tm, hid), lambda i: (i, 0)),
                pl.BlockSpec((tm, hid), lambda i: (i, 0)),
                pl.BlockSpec((hid, Cout), lambda i: (0, 0)),
                pl.BlockSpec((hid, Cout), lambda i: (0, 0)),
                pl.BlockSpec((1, Cout), lambda i: (0, 0)),
            ],
            out_specs=pl.BlockSpec((tm, Cout), lambda i: (i, 0)),
        ),
        compiler_params=_cparams("parallel", vmem_limit_bytes=vmem_limit_bytes),
    )(x1.reshape(M, hid), x2.reshape(M, hid), wa, wb, bias.reshape(1, Cout))
    return out.reshape(N, H, W, Cout)


# ---------------------------------------------------------------------------
# Parameter construction (deterministic, synthetic; eval-mode BN folded to scale/bias)
# ---------------------------------------------------------------------------
def make_baseconv_params(key, cin, cout, k):
    kw, kg, kb, km, kv = jax.random.split(key, 5)
    w = jax.random.normal(kw, (cout, cin, k, k), jnp.float32) / jnp.sqrt(cin * k * k)
    gamma = 1.0 + 0.1 * jax.random.normal(kg, (cout,), jnp.float32)
    beta = 0.1 * jax.random.normal(kb, (cout,), jnp.float32)
    mean = 0.1 * jax.random.normal(km, (cout,), jnp.float32)
    var = jnp.abs(jax.random.normal(kv, (cout,), jnp.float32)) + 0.5
    eps = 1e-5
    scale = gamma / jnp.sqrt(var + eps)   # eval-mode BN folded into affine
    bias = beta - mean * scale
    return w, scale, bias


def _pw_weight(w):    # (Cout, Cin, 1, 1) -> (Cin, Cout)
    return jnp.transpose(w[:, :, 0, 0], (1, 0))


def _k3_weight(w):    # (Cout, Cin, 3, 3) -> (9, Cin, Cout), tap index = ky*3 + kx
    return jnp.transpose(w, (2, 3, 1, 0)).reshape(9, w.shape[1], w.shape[0])


# ---------------------------------------------------------------------------
# CSPLayer forward (Pallas) and pure-JAX reference
# ---------------------------------------------------------------------------
def csp_layer_pallas(x_nchw, params, shortcut=True, compute_dtype=None):
    (w1, s1, b1), (w2, s2, b2), (w3, s3, b3), bots = params
    x = jnp.transpose(x_nchw, (0, 2, 3, 1))                       # NCHW -> NHWC
    cdt = compute_dtype if compute_dtype is not None else x.dtype
    cast = lambda a: a.astype(cdt)
    hid = w1.shape[0]

    # Fold the BN scale into the conv weights (kernels only add a bias).
    w1m = cast(_pw_weight(w1) * s1[None, :])
    w2m = cast(_pw_weight(w2) * s2[None, :])
    x1, x2 = csp_stem(cast(x), w1m, b1, w2m, b2)                  # conv1 & conv2 fused

    for (wc1, sc1, bc1), (wc2, sc2, bc2) in bots:                 # fused Bottleneck(s)
        wc1m = cast(_pw_weight(wc1) * sc1[None, :])
        wc2m = cast(_k3_weight(wc2) * sc2[None, None, :])
        x1 = bottleneck_fused(x1, wc1m, bc1, wc2m, bc2,
                              use_add=shortcut)                   # in == out channels here

    w3a = cast(_pw_weight(w3)[:hid] * s3[None, :])                # conv3 over (x1 | x2)
    w3b = cast(_pw_weight(w3)[hid:] * s3[None, :])                # without materializing cat
    out = csp_merge(x1, x2, w3a, w3b, b3)
    return jnp.transpose(out, (0, 3, 1, 2)).astype(x_nchw.dtype)  # NHWC -> NCHW


def _baseconv_ref(x, w, scale, bias):
    k = w.shape[-1]
    pad = (k - 1) // 2
    y = jax.lax.conv_general_dilated(
        x, w, (1, 1), ((pad, pad), (pad, pad)),
        dimension_numbers=('NCHW', 'OIHW', 'NCHW'))
    y = y * scale[None, :, None, None] + bias[None, :, None, None]
    return _silu(y)


def csp_layer_ref(x, params, shortcut=True):
    (w1, s1, b1), (w2, s2, b2), (w3, s3, b3), bots = params
    x1 = _baseconv_ref(x, w1, s1, b1)
    x2 = _baseconv_ref(x, w2, s2, b2)
    for (wc1, sc1, bc1), (wc2, sc2, bc2) in bots:
        y = _baseconv_ref(x1, wc1, sc1, bc1)
        y = _baseconv_ref(y, wc2, sc2, bc2)
        x1 = y + x1 if shortcut else y
    xc = jnp.concatenate([x1, x2], axis=1)
    return _baseconv_ref(xc, w3, s3, b3)


if __name__ == "__main__":
    key = jax.random.PRNGKey(0)
    N, Cin, H, W = 2, 16, 16, 16
    Cout, n, expansion, shortcut = 16, 1, 0.5, True
    hid = int(Cout * expansion)

    keys = jax.random.split(key, 6)
    x = jax.random.normal(keys[0], (N, Cin, H, W), jnp.float32)

    p_conv1 = make_baseconv_params(keys[1], Cin, hid, 1)
    p_conv2 = make_baseconv_params(keys[2], Cin, hid, 1)
    p_conv3 = make_baseconv_params(keys[3], 2 * hid, Cout, 1)
    bkeys = jax.random.split(keys[4], 2 * n)
    bots = []
    for i in range(n):
        bots.append((make_baseconv_params(bkeys[2 * i], hid, hid, 1),
                     make_baseconv_params(bkeys[2 * i + 1], hid, hid, 3)))
    params = (p_conv1, p_conv2, p_conv3, bots)

    out = csp_layer_pallas(x, params, shortcut=shortcut)
    out = jax.block_until_ready(out)

    ref = csp_layer_ref(x, params, shortcut=shortcut)
    assert out.shape == (N, Cout, H, W), out.shape
    if not jnp.allclose(out, ref, atol=1e-4, rtol=1e-4):
        err = float(jnp.max(jnp.abs(out - ref)))
        raise RuntimeError(f"Pallas CSPLayer does not match reference (max abs err {err})")
    print("KERNEL_OK")
</pallas_src>

<mosaic_0001>
module attributes {stable_mosaic.version = 11 : i64} {
  func.func @_stem_kernel(%arg0: i32, %arg1: memref<512x16xf32, #tpu.memory_space<vmem>>, %arg2: memref<16x8xf32, #tpu.memory_space<vmem>>, %arg3: memref<1x8xf32, #tpu.memory_space<vmem>>, %arg4: memref<16x8xf32, #tpu.memory_space<vmem>>, %arg5: memref<1x8xf32, #tpu.memory_space<vmem>>, %arg6: memref<512x8xf32, #tpu.memory_space<vmem>>, %arg7: memref<512x8xf32, #tpu.memory_space<vmem>>) attributes {dimension_semantics = [#tpu.dimension_semantics<parallel>], iteration_bounds = array<i64: 1>, scalar_prefetch = 0 : i64, scratch_operands = 0 : i64, tpu.core_type = #tpu.core_type<tc>, window_params = [{transform_indices = @transform_0, window_bounds = array<i64: 512, 16>}, {pipeline_mode = #tpu.pipeline_mode<synchronous>, transform_indices = @transform_1, window_bounds = array<i64: 16, 8>}, {pipeline_mode = #tpu.pipeline_mode<synchronous>, transform_indices = @transform_2, window_bounds = array<i64: 1, 8>}, {pipeline_mode = #tpu.pipeline_mode<synchronous>, transform_indices = @transform_3, window_bounds = array<i64: 16, 8>}, {pipeline_mode = #tpu.pipeline_mode<synchronous>, transform_indices = @transform_4, window_bounds = array<i64: 1, 8>}, {transform_indices = @transform_5, window_bounds = array<i64: 512, 8>}, {transform_indices = @transform_6, window_bounds = array<i64: 512, 8>}]} {
    %c0 = arith.constant 0 : index
    %c0_0 = arith.constant 0 : index
    %0 = vector.load %arg1[%c0, %c0_0] : memref<512x16xf32, #tpu.memory_space<vmem>>, vector<512x16xf32>
    %c0_1 = arith.constant 0 : index
    %c0_2 = arith.constant 0 : index
    %1 = vector.load %arg2[%c0_1, %c0_2] : memref<16x8xf32, #tpu.memory_space<vmem>>, vector<16x8xf32>
    %cst = arith.constant dense<0.000000e+00> : vector<512x8xf32>
    %2 = tpu.matmul %0, %1, %cst {dimension_numbers = #tpu.dot_dimension_numbers<[1], [0], [0], [1], [0, 0, 1, 1], [], []>} : vector<512x16xf32>, vector<16x8xf32>, vector<512x8xf32> -> vector<512x8xf32>
    %c0_3 = arith.constant 0 : index
    %c0_4 = arith.constant 0 : index
    %3 = vector.load %arg3[%c0_3, %c0_4] : memref<1x8xf32, #tpu.memory_space<vmem>>, vector<1x8xf32>
    %4 = vector.broadcast %3 : vector<1x8xf32> to vector<512x8xf32>
    %5 = arith.addf %2, %4 : vector<512x8xf32>
    %c0_5 = arith.constant 0 : index
    %c0_6 = arith.constant 0 : index
    %6 = vector.load %arg4[%c0_5, %c0_6] : memref<16x8xf32, #tpu.memory_space<vmem>>, vector<16x8xf32>
    %cst_7 = arith.constant dense<0.000000e+00> : vector<512x8xf32>
    %7 = tpu.matmul %0, %6, %cst_7 {dimension_numbers = #tpu.dot_dimension_numbers<[1], [0], [0], [1], [0, 0, 1, 1], [], []>} : vector<512x16xf32>, vector<16x8xf32>, vector<512x8xf32> -> vector<512x8xf32>
    %c0_8 = arith.constant 0 : index
    %c0_9 = arith.constant 0 : index
    %8 = vector.load %arg5[%c0_8, %c0_9] : memref<1x8xf32, #tpu.memory_space<vmem>>, vector<1x8xf32>
    %9 = vector.broadcast %8 : vector<1x8xf32> to vector<512x8xf32>
    %10 = arith.addf %7, %9 : vector<512x8xf32>
    %11 = arith.negf %5 : vector<512x8xf32>
    %12 = math.exp %11 : vector<512x8xf32>
    %cst_10 = arith.constant 1.000000e+00 : f32
    %13 = vector.broadcast %cst_10 : f32 to vector<512x8xf32>
    %14 = arith.addf %13, %12 : vector<512x8xf32>
    %15 = arith.divf %13, %14 : vector<512x8xf32>
    %16 = arith.mulf %5, %15 : vector<512x8xf32>
    %c0_11 = arith.constant 0 : index
    %c0_12 = arith.constant 0 : index
    %17 = vector.load %arg6[%c0_11, %c0_12] : memref<512x8xf32, #tpu.memory_space<vmem>>, vector<512x8xf32>
    tpu.vector_store %arg6[%c0_11, %c0_12], %16 {strides = array<i32>} : memref<512x8xf32, #tpu.memory_space<vmem>>, vector<512x8xf32>,
    %18 = arith.negf %10 : vector<512x8xf32>
    %19 = math.exp %18 : vector<512x8xf32>
    %cst_13 = arith.constant 1.000000e+00 : f32
    %20 = vector.broadcast %cst_13 : f32 to vector<512x8xf32>
    %21 = arith.addf %20, %19 : vector<512x8xf32>
    %22 = arith.divf %20, %21 : vector<512x8xf32>
    %23 = arith.mulf %10, %22 : vector<512x8xf32>
    %c0_14 = arith.constant 0 : index
    %c0_15 = arith.constant 0 : index
    %24 = vector.load %arg7[%c0_14, %c0_15] : memref<512x8xf32, #tpu.memory_space<vmem>>, vector<512x8xf32>
    tpu.vector_store %arg7[%c0_14, %c0_15], %23 {strides = array<i32>} : memref<512x8xf32, #tpu.memory_space<vmem>>, vector<512x8xf32>,
    return
  }
  func.func @transform_0(%arg0: i32) -> (i32, i32) {
    %c0_i32 = arith.constant 0 : i32
    %c0_i32_0 = arith.constant 0 : i32
    return %arg0, %c0_i32 : i32, i32
  }
  func.func @transform_1(%arg0: i32) -> (i32, i32) {
    %c0_i32 = arith.constant 0 : i32
    %c0_i32_0 = arith.constant 0 : i32
    %c0_i32_1 = arith.constant 0 : i32
    return %c0_i32, %c0_i32_0 : i32, i32
  }
  func.func @transform_2(%arg0: i32) -> (i32, i32) {
    %c0_i32 = arith.constant 0 : i32
    %c0_i32_0 = arith.constant 0 : i32
    %c0_i32_1 = arith.constant 0 : i32
    return %c0_i32, %c0_i32_0 : i32, i32
  }
  func.func @transform_3(%arg0: i32) -> (i32, i32) {
    %c0_i32 = arith.constant 0 : i32
    %c0_i32_0 = arith.constant 0 : i32
    %c0_i32_1 = arith.constant 0 : i32
    return %c0_i32, %c0_i32_0 : i32, i32
  }
  func.func @transform_4(%arg0: i32) -> (i32, i32) {
    %c0_i32 = arith.constant 0 : i32
    %c0_i32_0 = arith.constant 0 : i32
    %c0_i32_1 = arith.constant 0 : i32
    return %c0_i32, %c0_i32_0 : i32, i32
  }
  func.func @transform_5(%arg0: i32) -> (i32, i32) {
    %c0_i32 = arith.constant 0 : i32
    %c0_i32_0 = arith.constant 0 : i32
    return %arg0, %c0_i32 : i32, i32
  }
  func.func @transform_6(%arg0: i32) -> (i32, i32) {
    %c0_i32 = arith.constant 0 : i32
    %c0_i32_0 = arith.constant 0 : i32
    return %arg0, %c0_i32 : i32, i32
  }
}

</mosaic_0001>

<llo_original>
// kernel: tpu_custom_call.1
$region0: #{tpu_custom_call.1}
  #allocation0 [shape = 'u32[]', space=smem, size = 0x4, offset = 0x4, fixed_abs, tag = 'smem constant byte address 0x4 - core index']
  #allocation1 [shape = 'u32[144,128]{1,0:T(1,128)}', space=vmem, size = 0x12000, scoped, tag = 'internal scratch']
  %s0 = inlined_call_operand.vmem [shape: f32[512,16], index: 0, kind: input, shape index: {}]
  %s1 = inlined_call_operand.vmem [shape: f32[16,8], index: 1, kind: input, shape index: {}]
  %s2 = inlined_call_operand.vmem [shape: f32[1,8], index: 2, kind: input, shape index: {}]
  %s3 = inlined_call_operand.vmem [shape: f32[16,8], index: 3, kind: input, shape index: {}]
  %s4 = inlined_call_operand.vmem [shape: f32[1,8], index: 4, kind: input, shape index: {}]
  %s5 = inlined_call_operand.vmem [shape: f32[512,8], index: 5, kind: output, shape index: {0}]
  %s6 = inlined_call_operand.vmem [shape: f32[512,8], index: 6, kind: output, shape index: {1}]
  %7 = xla_tuple %s5, %s6
  %s8 = sld [smem:[#allocation0]]
  $region38: #{tpu_custom_call.1} parent=0
    _
  %s10 = ssub.s32 1, %s8
  %s11 = scalar_select 0, %s10, %s8
  // Predicated region
  $region2: #{tpu_custom_call.1} parent=0 // pred_check
    _
  $region3: #{tpu_custom_call.1} parent=0 // pred_check_branch
    %13 = sbr.rel (0) target = $region5
  $region4: #{tpu_custom_call.1} parent=0 // pred_region
    _
  $region5: #{tpu_custom_call.1} parent=0 // pred_fallthru
    _
  // Predicated region
  $region6: #{tpu_custom_call.1} parent=0 // pred_check
    _
  $region7: #{tpu_custom_call.1} parent=0 // pred_check_branch
    %15 = sbr.rel (0) target = $region9
  $region8: #{tpu_custom_call.1} parent=0 // pred_region
    _
  $region9: #{tpu_custom_call.1} parent=0 // pred_fallthru
    _
  // Predicated region
  $region10: #{tpu_custom_call.1} parent=0 // pred_check
    _
  $region11: #{tpu_custom_call.1} parent=0 // pred_check_branch
    %17 = sbr.rel (0) target = $region13
  $region12: #{tpu_custom_call.1} parent=0 // pred_region
    _
  $region13: #{tpu_custom_call.1} parent=0 // pred_fallthru
    _
  // Predicated region
  $region14: #{tpu_custom_call.1} parent=0 // pred_check
    _
  $region15: #{tpu_custom_call.1} parent=0 // pred_check_branch
    %19 = sbr.rel (0) target = $region17
  $region16: #{tpu_custom_call.1} parent=0 // pred_region
    _
  $region17: #{tpu_custom_call.1} parent=0 // pred_fallthru
    _
  // Predicated region
  $region18: #{tpu_custom_call.1} parent=0 // pred_check
    _
  $region19: #{tpu_custom_call.1} parent=0 // pred_check_branch
    %21 = sbr.rel (0) target = $region21
  $region20: #{tpu_custom_call.1} parent=0 // pred_region
    _
  $region21: #{tpu_custom_call.1} parent=0 // pred_fallthru
    _
  %v22 = vld [vmem:[%s0] sm:$0xff]
  %v23 = vld [vmem:[%s0 + $0x8] sm:$0xff]
  %v24 = vld [vmem:[%s0 + $0x10] sm:$0xff]
  %v25 = vld [vmem:[%s0 + $0x18] sm:$0xff]
  %v26 = vld [vmem:[%s0 + $0x20] sm:$0xff]
  %v27 = vld [vmem:[%s0 + $0x28] sm:$0xff]
  %v28 = vld [vmem:[%s0 + $0x30] sm:$0xff]
  %v29 = vld [vmem:[%s0 + $0x38] sm:$0xff]
  %v30 = vld [vmem:[%s0 + $0x40] sm:$0xff]
  %v31 = vld [vmem:[%s0 + $0x48] sm:$0xff]
  %v32 = vld [vmem:[%s0 + $0x50] sm:$0xff]
  %v33 = vld [vmem:[%s0 + $0x58] sm:$0xff]
  %v34 = vld [vmem:[%s0 + $0x60] sm:$0xff]
  %v35 = vld [vmem:[%s0 + $0x68] sm:$0xff]
  %v36 = vld [vmem:[%s0 + $0x70] sm:$0xff]
  %v37 = vld [vmem:[%s0 + $0x78] sm:$0xff]
  %v38 = vld [vmem:[%s0 + $0x80] sm:$0xff]
  %v39 = vld [vmem:[%s0 + $0x88] sm:$0xff]
  %v40 = vld [vmem:[%s0 + $0x90] sm:$0xff]
  %v41 = vld [vmem:[%s0 + $0x98] sm:$0xff]
  %v42 = vld [vmem:[%s0 + $0xa0] sm:$0xff]
  %v43 = vld [vmem:[%s0 + $0xa8] sm:$0xff]
  %v44 = vld [vmem:[%s0 + $0xb0] sm:$0xff]
  %v45 = vld [vmem:[%s0 + $0xb8] sm:$0xff]
  %v46 = vld [vmem:[%s0 + $0xc0] sm:$0xff]
  %v47 = vld [vmem:[%s0 + $0xc8] sm:$0xff]
  %v48 = vld [vmem:[%s0 + $0xd0] sm:$0xff]
  %v49 = vld [vmem:[%s0 + $0xd8] sm:$0xff]
  %v50 = vld [vmem:[%s0 + $0xe0] sm:$0xff]
  %v51 = vld [vmem:[%s0 + $0xe8] sm:$0xff]
  %v52 = vld [vmem:[%s0 + $0xf0] sm:$0xff]
  %v53 = vld [vmem:[%s0 + $0xf8] sm:$0xff]
  %v54 = vld [vmem:[%s0 + $0x100] sm:$0xff]
  %v55 = vld [vmem:[%s0 + $0x108] sm:$0xff]
  %v56 = vld [vmem:[%s0 + $0x110] sm:$0xff]
  %v57 = vld [vmem:[%s0 + $0x118] sm:$0xff]
  %v58 = vld [vmem:[%s0 + $0x120] sm:$0xff]
  %v59 = vld [vmem:[%s0 + $0x128] sm:$0xff]
  %v60 = vld [vmem:[%s0 + $0x130] sm:$0xff]
  %v61 = vld [vmem:[%s0 + $0x138] sm:$0xff]
  %v62 = vld [vmem:[%s0 + $0x140] sm:$0xff]
  %v63 = vld [vmem:[%s0 + $0x148] sm:$0xff]
  %v64 = vld [vmem:[%s0 + $0x150] sm:$0xff]
  %v65 = vld [vmem:[%s0 + $0x158] sm:$0xff]
  %v66 = vld [vmem:[%s0 + $0x160] sm:$0xff]
  %v67 = vld [vmem:[%s0 + $0x168] sm:$0xff]
  %v68 = vld [vmem:[%s0 + $0x170] sm:$0xff]
  %v69 = vld [vmem:[%s0 + $0x178] sm:$0xff]
  %v70 = vld [vmem:[%s0 + $0x180] sm:$0xff]
  %v71 = vld [vmem:[%s0 + $0x188] sm:$0xff]
  %v72 = vld [vmem:[%s0 + $0x190] sm:$0xff]
  %v73 = vld [vmem:[%s0 + $0x198] sm:$0xff]
  %v74 = vld [vmem:[%s0 + $0x1a0] sm:$0xff]
  %v75 = vld [vmem:[%s0 + $0x1a8] sm:$0xff]
  %v76 = vld [vmem:[%s0 + $0x1b0] sm:$0xff]
  %v77 = vld [vmem:[%s0 + $0x1b8] sm:$0xff]
  %v78 = vld [vmem:[%s0 + $0x1c0] sm:$0xff]
  %v79 = vld [vmem:[%s0 + $0x1c8] sm:$0xff]
  %v80 = vld [vmem:[%s0 + $0x1d0] sm:$0xff]
  %v81 = vld [vmem:[%s0 + $0x1d8] sm:$0xff]
  %v82 = vld [vmem:[%s0 + $0x1e0] sm:$0xff]
  %v83 = vld [vmem:[%s0 + $0x1e8] sm:$0xff]
  %v84 = vld [vmem:[%s0 + $0x1f0] sm:$0xff]
  %v85 = vld [vmem:[%s0 + $0x1f8] sm:$0xff]
  %v86 = vld [vmem:[%s1] sm:$0xff]
  %v87 = vld [vmem:[%s1 + $0x8] sm:$0xff]
  %v88 = vld [vmem:[%s2] sm:$0x1]
  %v90 = vlaneseq
  %v91 = vshrl.u32 %v90, 7
  %v92 = vsub.s32 0, %v91
  %v93 = vrot.slane %v88, %v92
  %vm95 = vcmask 130048
  %v97 = vsel %vm95, %v22, 0
  %v100 = vsel %vm95, %v23, 0
  %v103 = vsel %vm95, %v24, 0
  %v106 = vsel %vm95, %v25, 0
  %v109 = vsel %vm95, %v26, 0
  %v112 = vsel %vm95, %v27, 0
  %v115 = vsel %vm95, %v28, 0
  %v118 = vsel %vm95, %v29, 0
  %v121 = vsel %vm95, %v30, 0
  %v124 = vsel %vm95, %v31, 0
  %v127 = vsel %vm95, %v32, 0
  %v130 = vsel %vm95, %v33, 0
  %v133 = vsel %vm95, %v34, 0
  %v136 = vsel %vm95, %v35, 0
  %v139 = vsel %vm95, %v36, 0
  %v142 = vsel %vm95, %v37, 0
  %v145 = vsel %vm95, %v38, 0
  %v148 = vsel %vm95, %v39, 0
  %v151 = vsel %vm95, %v40, 0
  %v154 = vsel %vm95, %v41, 0
  %v157 = vsel %vm95, %v42, 0
  %v160 = vsel %vm95, %v43, 0
  %v163 = vsel %vm95, %v44, 0
  %v166 = vsel %vm95, %v45, 0
  %v169 = vsel %vm95, %v46, 0
  %v172 = vsel %vm95, %v47, 0
  %v175 = vsel %vm95, %v48, 0
  %v178 = vsel %vm95, %v49, 0
  %v181 = vsel %vm95, %v50, 0
  %v184 = vsel %vm95, %v51, 0
  %v187 = vsel %vm95, %v52, 0
  %v190 = vsel %vm95, %v53, 0
  %v193 = vsel %vm95, %v54, 0
  %v196 = vsel %vm95, %v55, 0
  %v199 = vsel %vm95, %v56, 0
  %v202 = vsel %vm95, %v57, 0
  %v205 = vsel %vm95, %v58, 0
  %v208 = vsel %vm95, %v59, 0
  %v211 = vsel %vm95, %v60, 0
  %v214 = vsel %vm95, %v61, 0
  %v217 = vsel %vm95, %v62, 0
  %v220 = vsel %vm95, %v63, 0
  %v223 = vsel %vm95, %v64, 0
  %v226 = vsel %vm95, %v65, 0
  %v229 = vsel %vm95, %v66, 0
  %v232 = vsel %vm95, %v67, 0
  %v235 = vsel %vm95, %v68, 0
  %v238 = vsel %vm95, %v69, 0
  %v241 = vsel %vm95, %v70, 0
  %v244 = vsel %vm95, %v71, 0
  %v247 = vsel %vm95, %v72, 0
  %v250 = vsel %vm95, %v73, 0
  %v253 = vsel %vm95, %v74, 0
  %v256 = vsel %vm95, %v75, 0
  %v259 = vsel %vm95, %v76, 0
  %v262 = vsel %vm95, %v77, 0
  %v265 = vsel %vm95, %v78, 0
  %v268 = vsel %vm95, %v79, 0
  %v271 = vsel %vm95, %v80, 0
  %v274 = vsel %vm95, %v81, 0
  %v277 = vsel %vm95, %v82, 0
  %v280 = vsel %vm95, %v83, 0
  %v283 = vsel %vm95, %v84, 0
  %v286 = vsel %vm95, %v85, 0
  %288 = vmatprep.subr.mxu0 0.0
  %289 = vmatpush1.msra.mxu0 %v86
  %290 = vmatprep.subr.mxu0 0.0
  %291 = vmatpush1.msra.mxu0 %v87
  %292 = vmatprep.subr.mxu0 0.0
  %293 = vmatpush1.msra.mxu0 0.0
  %294 = vmatprep.subr.mxu0 0.0
  %295 = vmatpush1.msra.mxu0 0.0
  %296 = vmatprep.subr.mxu0 0.0
  %297 = vmatpush1.msra.mxu0 0.0
  %298 = vmatprep.subr.mxu0 0.0
  %299 = vmatpush1.msra.mxu0 0.0
  %300 = vmatprep.subr.mxu0 0.0
  %301 = vmatpush1.msra.mxu0 0.0
  %302 = vmatprep.subr.mxu0 0.0
  %303 = vmatpush1.msra.mxu0 0.0
  %304 = vmatprep.subr.mxu0 0.0
  %305 = vmatpush1.msra.mxu0 0.0
  %306 = vmatprep.subr.mxu0 0.0
  %307 = vmatpush1.msra.mxu0 0.0
  %308 = vmatprep.subr.mxu0 0.0
  %309 = vmatpush1.msra.mxu0 0.0
  %310 = vmatprep.subr.mxu0 0.0
  %311 = vmatpush1.msra.mxu0 0.0
  %312 = vmatprep.subr.mxu0 0.0
  %313 = vmatpush1.msra.mxu0 0.0
  %314 = vmatprep.subr.mxu0 0.0
  %315 = vmatpush1.msra.mxu0 0.0
  %316 = vmatprep.subr.mxu0 0.0
  %317 = vmatpush1.msra.mxu0 0.0
  %318 = vmatprep.subr.mxu0 0.0
  %319 = vmatpush1.msra.mxu0 0.0
  %320 = vmatprep.subr.mxu0 0.0
  %321 = vmatpush1.msra.mxu0 0.0
  %322 = vmatprep.subr.mxu0 0.0
  %323 = vmatpush1.msra.mxu0 0.0
  %324 = vmatprep.subr.mxu0 0.0
  %325 = vmatpush1.msra.mxu0 0.0
  %326 = vmatprep.subr.mxu0 0.0
  %327 = vmatpush1.msra.mxu0 0.0
  %328 = vmatprep.subr.mxu0 0.0
  %329 = vmatpush1.msra.mxu0 0.0
  %330 = vmatprep.subr.mxu0 0.0
  %331 = vmatpush1.msra.mxu0 0.0
  %332 = vmatprep.subr.mxu0 0.0
  %333 = vmatpush1.msra.mxu0 0.0
  %334 = vmatprep.subr.mxu0 0.0
  %335 = vmatpush1.msra.mxu0 0.0
  %336 = vmatprep.subr.mxu0 0.0
  %337 = vmatpush1.msra.mxu0 0.0
  %338 = vmatprep.subr.mxu0 0.0
  %339 = vmatpush1.msra.mxu0 0.0
  %340 = vmatprep.subr.mxu0 0.0
  %341 = vmatpush1.msra.mxu0 0.0
  %342 = vmatprep.subr.mxu0 0.0
  %343 = vmatpush1.msra.mxu0 0.0
  %344 = vmatprep.subr.mxu0 0.0
  %345 = vmatpush1.msra.mxu0 0.0
  %346 = vmatprep.subr.mxu0 0.0
  %347 = vmatpush1.msra.mxu0 0.0
  %348 = vmatprep.subr.mxu0 0.0
  %349 = vmatpush1.msra.mxu0 0.0
  %350 = vmatprep.subr.mxu0 0.0
  %351 = vmatpush1.msra.mxu0 0.0
  %352 = vmatprep.mubr.f32.mxu0 0.0
  %353 = vmatmul.mubr.f32.gmra.mrb[0].mxu0 %v97
  %v354 = vpop.f32.mrb[0].mxu0
  %v355 = vadd.f32 %v93, %v354
  %v356 = vpop.f32.mrb[0].mxu0
  %357 = vmatprep.mubr.f32.mxu0 0.0
  %358 = vmatmul.mubr.f32.gmra.mrb[0].mxu0 %v100
  %v359 = vpop.f32.mrb[0].mxu0
  %v360 = vadd.f32 %v93, %v359
  %v361 = vpop.f32.mrb[0].mxu0
  %362 = vmatprep.mubr.f32.mxu0 0.0
  %363 = vmatmul.mubr.f32.gmra.mrb[0].mxu0 %v103
  %v364 = vpop.f32.mrb[0].mxu0
  %v365 = vadd.f32 %v93, %v364
  %v366 = vpop.f32.mrb[0].mxu0
  %367 = vmatprep.mubr.f32.mxu0 0.0
  %368 = vmatmul.mubr.f32.gmra.mrb[0].mxu0 %v106
  %v369 = vpop.f32.mrb[0].mxu0
  %v370 = vadd.f32 %v93, %v369
  %v371 = vpop.f32.mrb[0].mxu0
  %372 = vmatprep.mubr.f32.mxu0 0.0
  %373 = vmatmul.mubr.f32.gmra.mrb[0].mxu0 %v109
  %v374 = vpop.f32.mrb[0].mxu0
  %v375 = vadd.f32 %v93, %v374
  %v376 = vpop.f32.mrb[0].mxu0
  %377 = vmatprep.mubr.f32.mxu0 0.0
  %378 = vmatmul.mubr.f32.gmra.mrb[0].mxu0 %v112
  %v379 = vpop.f32.mrb[0].mxu0
  %v380 = vadd.f32 %v93, %v379
  %v381 = vpop.f32.mrb[0].mxu0
  %382 = vmatprep.mubr.f32.mxu0 0.0
  %383 = vmatmul.mubr.f32.gmra.mrb[0].mxu0 %v115
  %v384 = vpop.f32.mrb[0].mxu0
  %v385 = vadd.f32 %v93, %v384
  %v386 = vpop.f32.mrb[0].mxu0
  %387 = vmatprep.mubr.f32.mxu0 0.0
  %388 = vmatmul.mubr.f32.gmra.mrb[0].mxu0 %v118
  %v389 = vpop.f32.mrb[0].mxu0
  %v390 = vadd.f32 %v93, %v389
  %v391 = vpop.f32.mrb[0].mxu0
  %392 = vmatprep.mubr.f32.mxu0 0.0
  %393 = vmatmul.mubr.f32.gmra.mrb[0].mxu0 %v121
  %v394 = vpop.f32.mrb[0].mxu0
  %v395 = vadd.f32 %v93, %v394
  %v396 = vpop.f32.mrb[0].mxu0
  %397 = vmatprep.mubr.f32.mxu0 0.0
  %398 = vmatmul.mubr.f32.gmra.mrb[0].mxu0 %v124
  %v399 = vpop.f32.mrb[0].mxu0
  %v400 = vadd.f32 %v93, %v399
  %v401 = vpop.f32.mrb[0].mxu0
  %402 = vmatprep.mubr.f32.mxu0 0.0
  %403 = vmatmul.mubr.f32.gmra.mrb[0].mxu0 %v127
  %v404 = vpop.f32.mrb[0].mxu0
  %v405 = vadd.f32 %v93, %v404
  %v406 = vpop.f32.mrb[0].mxu0
  %407 = vmatprep.mubr.f32.mxu0 0.0
  %408 = vmatmul.mubr.f32.gmra.mrb[0].mxu0 %v130
  %v409 = vpop.f32.mrb[0].mxu0
  %v410 = vadd.f32 %v93, %v409
  %v411 = vpop.f32.mrb[0].mxu0
  %412 = vmatprep.mubr.f32.mxu0 0.0
  %413 = vmatmul.mubr.f32.gmra.mrb[0].mxu0 %v133
  %v414 = vpop.f32.mrb[0].mxu0
  %v415 = vadd.f32 %v93, %v414
  %v416 = vpop.f32.mrb[0].mxu0
  %417 = vmatprep.mubr.f32.mxu0 0.0
  %418 = vmatmul.mubr.f32.gmra.mrb[0].mxu0 %v136
  %v419 = vpop.f32.mrb[0].mxu0
  %v420 = vadd.f32 %v93, %v419
  %v421 = vpop.f32.mrb[0].mxu0
  %422 = vmatprep.mubr.f32.mxu0 0.0
  %423 = vmatmul.mubr.f32.gmra.mrb[0].mxu0 %v139
  %v424 = vpop.f32.mrb[0].mxu0
  %v425 = vadd.f32 %v93, %v424
  %v426 = vpop.f32.mrb[0].mxu0
  %427 = vmatprep.mubr.f32.mxu0 0.0
  %428 = vmatmul.mubr.f32.gmra.mrb[0].mxu0 %v142
  %v429 = vpop.f32.mrb[0].mxu0
  %v430 = vadd.f32 %v93, %v429
  %v431 = vpop.f32.mrb[0].mxu0
  %432 = vmatprep.mubr.f32.mxu0 0.0
  %433 = vmatmul.mubr.f32.gmra.mrb[0].mxu0 %v145
  %v434 = vpop.f32.mrb[0].mxu0
  %v435 = vadd.f32 %v93, %v434
  %v436 = vpop.f32.mrb[0].mxu0
  %437 = vmatprep.mubr.f32.mxu0 0.0
  %438 = vmatmul.mubr.f32.gmra.mrb[0].mxu0 %v148
  %v439 = vpop.f32.mrb[0].mxu0
  %v440 = vadd.f32 %v93, %v439
  %v441 = vpop.f32.mrb[0].mxu0
  %442 = vmatprep.mubr.f32.mxu0 0.0
  %443 = vmatmul.mubr.f32.gmra.mrb[0].mxu0 %v151
  %v444 = vpop.f32.mrb[0].mxu0
  %v445 = vadd.f32 %v93, %v444
  %v446 = vpop.f32.mrb[0].mxu0
  %447 = vmatprep.mubr.f32.mxu0 0.0
  %448 = vmatmul.mubr.f32.gmra.mrb[0].mxu0 %v154
  %v449 = vpop.f32.mrb[0].mxu0
  %v450 = vadd.f32 %v93, %v449
  %v451 = vpop.f32.mrb[0].mxu0
  %452 = vmatprep.mubr.f32.mxu0 0.0
  %453 = vmatmul.mubr.f32.gmra.mrb[0].mxu0 %v157
  %v454 = vpop.f32.mrb[0].mxu0
  %v455 = vadd.f32 %v93, %v454
  %v456 = vpop.f32.mrb[0].mxu0
  %457 = vmatprep.mubr.f32.mxu0 0.0
  %458 = vmatmul.mubr.f32.gmra.mrb[0].mxu0 %v160
  %v459 = vpop.f32.mrb[0].mxu0
  %v460 = vadd.f32 %v93, %v459
  %v461 = vpop.f32.mrb[0].mxu0
  %462 = vmatprep.mubr.f32.mxu0 0.0
  %463 = vmatmul.mubr.f32.gmra.mrb[0].mxu0 %v163
  %v464 = vpop.f32.mrb[0].mxu0
  %v465 = vadd.f32 %v93, %v464
  %v466 = vpop.f32.mrb[0].mxu0
  %467 = vmatprep.mubr.f32.mxu0 0.0
  %468 = vmatmul.mubr.f32.gmra.mrb[0].mxu0 %v166
  %v469 = vpop.f32.mrb[0].mxu0
  %v470 = vadd.f32 %v93, %v469
  %v471 = vpop.f32.mrb[0].mxu0
  %472 = vmatprep.mubr.f32.mxu0 0.0
  %473 = vmatmul.mubr.f32.gmra.mrb[0].mxu0 %v169
  %v474 = vpop.f32.mrb[0].mxu0
  %v475 = vadd.f32 %v93, %v474
  %v476 = vpop.f32.mrb[0].mxu0
  %477 = vmatprep.mubr.f32.mxu0 0.0
  %478 = vmatmul.mubr.f32.gmra.mrb[0].mxu0 %v172
  %v479 = vpop.f32.mrb[0].mxu0
  %v480 = vadd.f32 %v93, %v479
  %v481 = vpop.f32.mrb[0].mxu0
  %482 = vmatprep.mubr.f32.mxu0 0.0
  %483 = vmatmul.mubr.f32.gmra.mrb[0].mxu0 %v175
  %v484 = vpop.f32.mrb[0].mxu0
  %v485 = vadd.f32 %v93, %v484
  %v486 = vpop.f32.mrb[0].mxu0
  %487 = vmatprep.mubr.f32.mxu0 0.0
  %488 = vmatmul.mubr.f32.gmra.mrb[0].mxu0 %v178
  %v489 = vpop.f32.mrb[0].mxu0
  %v490 = vadd.f32 %v93, %v489
  %v491 = vpop.f32.mrb[0].mxu0
  %492 = vmatprep.mubr.f32.mxu0 0.0
  %493 = vmatmul.mubr.f32.gmra.mrb[0].mxu0 %v181
  %v494 = vpop.f32.mrb[0].mxu0
  %v495 = vadd.f32 %v93, %v494
  %v496 = vpop.f32.mrb[0].mxu0
  %497 = vmatprep.mubr.f32.mxu0 0.0
  %498 = vmatmul.mubr.f32.gmra.mrb[0].mxu0 %v184
  %v499 = vpop.f32.mrb[0].mxu0
  %v500 = vadd.f32 %v93, %v499
  %v501 = vpop.f32.mrb[0].mxu0
  %502 = vmatprep.mubr.f32.mxu0 0.0
  %503 = vmatmul.mubr.f32.gmra.mrb[0].mxu0 %v187
  %v504 = vpop.f32.mrb[0].mxu0
  %v505 = vadd.f32 %v93, %v504
  %v506 = vpop.f32.mrb[0].mxu0
  %507 = vmatprep.mubr.f32.mxu0 0.0
  %508 = vmatmul.mubr.f32.gmra.mrb[0].mxu0 %v190
  %v509 = vpop.f32.mrb[0].mxu0
  %v510 = vadd.f32 %v93, %v509
  %v511 = vpop.f32.mrb[0].mxu0
  %512 = vmatprep.mubr.f32.mxu0 0.0
  %513 = vmatmul.mubr.f32.gmra.mrb[0].mxu0 %v193
  %v514 = vpop.f32.mrb[0].mxu0
  %v515 = vadd.f32 %v93, %v514
  %v516 = vpop.f32.mrb[0].mxu0
  %517 = vmatprep.mubr.f32.mxu0 0.0
  %518 = vmatmul.mubr.f32.gmra.mrb[0].mxu0 %v196
  %v519 = vpop.f32.mrb[0].mxu0
  %v520 = vadd.f32 %v93, %v519
  %v521 = vpop.f32.mrb[0].mxu0
  %522 = vmatprep.mubr.f32.mxu0 0.0
  %523 = vmatmul.mubr.f32.gmra.mrb[0].mxu0 %v199
  %v524 = vpop.f32.mrb[0].mxu0
  %v525 = vadd.f32 %v93, %v524
  %v526 = vpop.f32.mrb[0].mxu0
  %527 = vmatprep.mubr.f32.mxu0 0.0
  %528 = vmatmul.mubr.f32.gmra.mrb[0].mxu0 %v202
  %v529 = vpop.f32.mrb[0].mxu0
  %v530 = vadd.f32 %v93, %v529
  %v531 = vpop.f32.mrb[0].mxu0
  %532 = vmatprep.mubr.f32.mxu0 0.0
  %533 = vmatmul.mubr.f32.gmra.mrb[0].mxu0 %v205
  %v534 = vpop.f32.mrb[0].mxu0
  %v535 = vadd.f32 %v93, %v534
  %v536 = vpop.f32.mrb[0].mxu0
  %537 = vmatprep.mubr.f32.mxu0 0.0
  %538 = vmatmul.mubr.f32.gmra.mrb[0].mxu0 %v208
  %v539 = vpop.f32.mrb[0].mxu0
  %v540 = vadd.f32 %v93, %v539
  %v541 = vpop.f32.mrb[0].mxu0
  %542 = vmatprep.mubr.f32.mxu0 0.0
  %543 = vmatmul.mubr.f32.gmra.mrb[0].mxu0 %v211
  %v544 = vpop.f32.mrb[0].mxu0
  %v545 = vadd.f32 %v93, %v544
  %v546 = vpop.f32.mrb[0].mxu0
  %547 = vmatprep.mubr.f32.mxu0 0.0
  %548 = vmatmul.mubr.f32.gmra.mrb[0].mxu0 %v214
  %v549 = vpop.f32.mrb[0].mxu0
  %v550 = vadd.f32 %v93, %v549
  %v551 = vpop.f32.mrb[0].mxu0
  %552 = vmatprep.mubr.f32.mxu0 0.0
  %553 = vmatmul.mubr.f32.gmra.mrb[0].mxu0 %v217
  %v554 = vpop.f32.mrb[0].mxu0
  %v555 = vadd.f32 %v93, %v554
  %v556 = vpop.f32.mrb[0].mxu0
  %557 = vmatprep.mubr.f32.mxu0 0.0
  %558 = vmatmul.mubr.f32.gmra.mrb[0].mxu0 %v220
  %v559 = vpop.f32.mrb[0].mxu0
  %v560 = vadd.f32 %v93, %v559
  %v561 = vpop.f32.mrb[0].mxu0
  %562 = vmatprep.mubr.f32.mxu0 0.0
  %563 = vmatmul.mubr.f32.gmra.mrb[0].mxu0 %v223
  %v564 = vpop.f32.mrb[0].mxu0
  %v565 = vadd.f32 %v93, %v564
  %v566 = vpop.f32.mrb[0].mxu0
  %567 = vmatprep.mubr.f32.mxu0 0.0
  %568 = vmatmul.mubr.f32.gmra.mrb[0].mxu0 %v226
  %v569 = vpop.f32.mrb[0].mxu0
  %v570 = vadd.f32 %v93, %v569
  %v571 = vpop.f32.mrb[0].mxu0
  %572 = vmatprep.mubr.f32.mxu0 0.0
  %573 = vmatmul.mubr.f32.gmra.mrb[0].mxu0 %v229
  %v574 = vpop.f32.mrb[0].mxu0
  %v575 = vadd.f32 %v93, %v574
  %v576 = vpop.f32.mrb[0].mxu0
  %577 = vmatprep.mubr.f32.mxu0 0.0
  %578 = vmatmul.mubr.f32.gmra.mrb[0].mxu0 %v232
  %v579 = vpop.f32.mrb[0].mxu0
  %v580 = vadd.f32 %v93, %v579
  %v581 = vpop.f32.mrb[0].mxu0
  %582 = vmatprep.mubr.f32.mxu0 0.0
  %583 = vmatmul.mubr.f32.gmra.mrb[0].mxu0 %v235
  %v584 = vpop.f32.mrb[0].mxu0
  %v585 = vadd.f32 %v93, %v584
  %v586 = vpop.f32.mrb[0].mxu0
  %587 = vmatprep.mubr.f32.mxu0 0.0
  %588 = vmatmul.mubr.f32.gmra.mrb[0].mxu0 %v238
  %v589 = vpop.f32.mrb[0].mxu0
  %v590 = vadd.f32 %v93, %v589
  %v591 = vpop.f32.mrb[0].mxu0
  %592 = vmatprep.mubr.f32.mxu0 0.0
  %593 = vmatmul.mubr.f32.gmra.mrb[0].mxu0 %v241
  %v594 = vpop.f32.mrb[0].mxu0
  %v595 = vadd.f32 %v93, %v594
  %v596 = vpop.f32.mrb[0].mxu0
  %597 = vmatprep.mubr.f32.mxu0 0.0
  %598 = vmatmul.mubr.f32.gmra.mrb[0].mxu0 %v244
  %v599 = vpop.f32.mrb[0].mxu0
  %v600 = vadd.f32 %v93, %v599
  %v601 = vpop.f32.mrb[0].mxu0
  %602 = vmatprep.mubr.f32.mxu0 0.0
  %603 = vmatmul.mubr.f32.gmra.mrb[0].mxu0 %v247
  %v604 = vpop.f32.mrb[0].mxu0
  %v605 = vadd.f32 %v93, %v604
  %v606 = vpop.f32.mrb[0].mxu0
  %607 = vmatprep.mubr.f32.mxu0 0.0
  %608 = vmatmul.mubr.f32.gmra.mrb[0].mxu0 %v250
  %v609 = vpop.f32.mrb[0].mxu0
  %v610 = vadd.f32 %v93, %v609
  %v611 = vpop.f32.mrb[0].mxu0
  %612 = vmatprep.mubr.f32.mxu0 0.0
  %613 = vmatmul.mubr.f32.gmra.mrb[0].mxu0 %v253
  %v614 = vpop.f32.mrb[0].mxu0
  %v615 = vadd.f32 %v93, %v614
  %v616 = vpop.f32.mrb[0].mxu0
  %617 = vmatprep.mubr.f32.mxu0 0.0
  %618 = vmatmul.mubr.f32.gmra.mrb[0].mxu0 %v256
  %v619 = vpop.f32.mrb[0].mxu0
  %v620 = vadd.f32 %v93, %v619
  %v621 = vpop.f32.mrb[0].mxu0
  %622 = vmatprep.mubr.f32.mxu0 0.0
  %623 = vmatmul.mubr.f32.gmra.mrb[0].mxu0 %v259
  %v624 = vpop.f32.mrb[0].mxu0
  %v625 = vadd.f32 %v93, %v624
  %v626 = vpop.f32.mrb[0].mxu0
  %627 = vmatprep.mubr.f32.mxu0 0.0
  %628 = vmatmul.mubr.f32.gmra.mrb[0].mxu0 %v262
  %v629 = vpop.f32.mrb[0].mxu0
  %v630 = vadd.f32 %v93, %v629
  %v631 = vpop.f32.mrb[0].mxu0
  %632 = vmatprep.mubr.f32.mxu0 0.0
  %633 = vmatmul.mubr.f32.gmra.mrb[0].mxu0 %v265
  %v634 = vpop.f32.mrb[0].mxu0
  %v635 = vadd.f32 %v93, %v634
  %v636 = vpop.f32.mrb[0].mxu0
  %637 = vmatprep.mubr.f32.mxu0 0.0
  %638 = vmatmul.mubr.f32.gmra.mrb[0].mxu0 %v268
  %v639 = vpop.f32.mrb[0].mxu0
  %v640 = vadd.f32 %v93, %v639
  %v641 = vpop.f32.mrb[0].mxu0
  %642 = vmatprep.mubr.f32.mxu0 0.0
  %643 = vmatmul.mubr.f32.gmra.mrb[0].mxu0 %v271
  %v644 = vpop.f32.mrb[0].mxu0
  %v645 = vadd.f32 %v93, %v644
  %v646 = vpop.f32.mrb[0].mxu0
  %647 = vmatprep.mubr.f32.mxu0 0.0
  %648 = vmatmul.mubr.f32.gmra.mrb[0].mxu0 %v274
  %v649 = vpop.f32.mrb[0].mxu0
  %v650 = vadd.f32 %v93, %v649
  %v651 = vpop.f32.mrb[0].mxu0
  %652 = vmatprep.mubr.f32.mxu0 0.0
  %653 = vmatmul.mubr.f32.gmra.mrb[0].mxu0 %v277
  %v654 = vpop.f32.mrb[0].mxu0
  %v655 = vadd.f32 %v93, %v654
  %v656 = vpop.f32.mrb[0].mxu0
  %657 = vmatprep.mubr.f32.mxu0 0.0
  %658 = vmatmul.mubr.f32.gmra.mrb[0].mxu0 %v280
  %v659 = vpop.f32.mrb[0].mxu0
  %v660 = vadd.f32 %v93, %v659
  %v661 = vpop.f32.mrb[0].mxu0
  %662 = vmatprep.mubr.f32.mxu0 0.0
  %663 = vmatmul.mubr.f32.gmra.mrb[0].mxu0 %v283
  %v664 = vpop.f32.mrb[0].mxu0
  %v665 = vadd.f32 %v93, %v664
  %v666 = vpop.f32.mrb[0].mxu0
  %667 = vmatprep.mubr.f32.mxu0 0.0
  %668 = vmatmul.mubr.f32.gmra.mrb[0].mxu0 %v286
  %v669 = vpop.f32.mrb[0].mxu0
  %v670 = vadd.f32 %v93, %v669
  %v671 = vpop.f32.mrb[0].mxu0
  %672 = vdwg.mxu0
  %v673 = vld [vmem:[%s3] sm:$0xff]
  %v674 = vld [vmem:[%s3 + $0x8] sm:$0xff]
  %v675 = vld [vmem:[%s4] sm:$0x1]
  %v677 = vlaneseq
  %v678 = vshrl.u32 %v677, 7
  %v679 = vsub.s32 0, %v678
  %v680 = vrot.slane %v675, %v679
  %682 = vmatprep.subr.mxu0 0.0
  %683 = vmatpush1.msra.mxu0 %v673
  %684 = vmatprep.subr.mxu0 0.0
  %685 = vmatpush1.msra.mxu0 %v674
  %686 = vmatprep.subr.mxu0 0.0
  %687 = vmatpush1.msra.mxu0 0.0
  %688 = vmatprep.subr.mxu0 0.0
  %689 = vmatpush1.msra.mxu0 0.0
  %690 = vmatprep.subr.mxu0 0.0
  %691 = vmatpush1.msra.mxu0 0.0
  %692 = vmatprep.subr.mxu0 0.0
  %693 = vmatpush1.msra.mxu0 0.0
  %694 = vmatprep.subr.mxu0 0.0
  %695 = vmatpush1.msra.mxu0 0.0
  %696 = vmatprep.subr.mxu0 0.0
  %697 = vmatpush1.msra.mxu0 0.0
  %698 = vmatprep.subr.mxu0 0.0
  %699 = vmatpush1.msra.mxu0 0.0
  %700 = vmatprep.subr.mxu0 0.0
  %701 = vmatpush1.msra.mxu0 0.0
  %702 = vmatprep.subr.mxu0 0.0
  %703 = vmatpush1.msra.mxu0 0.0
  %704 = vmatprep.subr.mxu0 0.0
  %705 = vmatpush1.msra.mxu0 0.0
  %706 = vmatprep.subr.mxu0 0.0
  %707 = vmatpush1.msra.mxu0 0.0
  %708 = vmatprep.subr.mxu0 0.0
  %709 = vmatpush1.msra.mxu0 0.0
  %710 = vmatprep.subr.mxu0 0.0
  %711 = vmatpush1.msra.mxu0 0.0
  %712 = vmatprep.subr.mxu0 0.0
  %713 = vmatpush1.msra.mxu0 0.0
  %714 = vmatprep.subr.mxu0 0.0
  %715 = vmatpush1.msra.mxu0 0.0
  %716 = vmatprep.subr.mxu0 0.0
  %717 = vmatpush1.msra.mxu0 0.0
  %718 = vmatprep.subr.mxu0 0.0
  %719 = vmatpush1.msra.mxu0 0.0
  %720 = vmatprep.subr.mxu0 0.0
  %721 = vmatpush1.msra.mxu0 0.0
  %722 = vmatprep.subr.mxu0 0.0
  %723 = vmatpush1.msra.mxu0 0.0
  %724 = vmatprep.subr.mxu0 0.0
  %725 = vmatpush1.msra.mxu0 0.0
  %726 = vmatprep.subr.mxu0 0.0
  %727 = vmatpush1.msra.mxu0 0.0
  %728 = vmatprep.subr.mxu0 0.0
  %729 = vmatpush1.msra.mxu0 0.0
  %730 = vmatprep.subr.mxu0 0.0
  %731 = vmatpush1.msra.mxu0 0.0
  %732 = vmatprep.subr.mxu0 0.0
  %733 = vmatpush1.msra.mxu0 0.0
  %734 = vmatprep.subr.mxu0 0.0
  %735 = vmatpush1.msra.mxu0 0.0
  %736 = vmatprep.subr.mxu0 0.0
  %737 = vmatpush1.msra.mxu0 0.0
  %738 = vmatprep.subr.mxu0 0.0
  %739 = vmatpush1.msra.mxu0 0.0
  %740 = vmatprep.subr.mxu0 0.0
  %741 = vmatpush1.msra.mxu0 0.0
  %742 = vmatprep.subr.mxu0 0.0
  %743 = vmatpush1.msra.mxu0 0.0
  %744 = vmatprep.subr.mxu0 0.0
  %745 = vmatpush1.msra.mxu0 0.0
  %746 = vmatprep.mubr.f32.mxu0 0.0
  %747 = vmatmul.mubr.f32.gmra.mrb[0].mxu0 %v97
  %v748 = vpop.f32.mrb[0].mxu0
  %v749 = vadd.f32 %v680, %v748
  %v750 = vpop.f32.mrb[0].mxu0
  %751 = vmatprep.mubr.f32.mxu0 0.0
  %752 = vmatmul.mubr.f32.gmra.mrb[0].mxu0 %v100
  %v753 = vpop.f32.mrb[0].mxu0
  %v754 = vadd.f32 %v680, %v753
  %v755 = vpop.f32.mrb[0].mxu0
  %756 = vmatprep.mubr.f32.mxu0 0.0
  %757 = vmatmul.mubr.f32.gmra.mrb[0].mxu0 %v103
  %v758 = vpop.f32.mrb[0].mxu0
  %v759 = vadd.f32 %v680, %v758
  %v760 = vpop.f32.mrb[0].mxu0
  %761 = vmatprep.mubr.f32.mxu0 0.0
  %762 = vmatmul.mubr.f32.gmra.mrb[0].mxu0 %v106
  %v763 = vpop.f32.mrb[0].mxu0
  %v764 = vadd.f32 %v680, %v763
  %v765 = vpop.f32.mrb[0].mxu0
  %766 = vmatprep.mubr.f32.mxu0 0.0
  %767 = vmatmul.mubr.f32.gmra.mrb[0].mxu0 %v109
  %v768 = vpop.f32.mrb[0].mxu0
  %v769 = vadd.f32 %v680, %v768
  %v770 = vpop.f32.mrb[0].mxu0
  %771 = vmatprep.mubr.f32.mxu0 0.0
  %772 = vmatmul.mubr.f32.gmra.mrb[0].mxu0 %v112
  %v773 = vpop.f32.mrb[0].mxu0
  %v774 = vadd.f32 %v680, %v773
  %v775 = vpop.f32.mrb[0].mxu0
  %776 = vmatprep.mubr.f32.mxu0 0.0
  %777 = vmatmul.mubr.f32.gmra.mrb[0].mxu0 %v115
  %v778 = vpop.f32.mrb[0].mxu0
  %v779 = vadd.f32 %v680, %v778
  %v780 = vpop.f32.mrb[0].mxu0
  %781 = vmatprep.mubr.f32.mxu0 0.0
  %782 = vmatmul.mubr.f32.gmra.mrb[0].mxu0 %v118
  %v783 = vpop.f32.mrb[0].mxu0
  %v784 = vadd.f32 %v680, %v783
  %v785 = vpop.f32.mrb[0].mxu0
  %786 = vmatprep.mubr.f32.mxu0 0.0
  %787 = vmatmul.mubr.f32.gmra.mrb[0].mxu0 %v121
  %v788 = vpop.f32.mrb[0].mxu0
  %v789 = vadd.f32 %v680, %v788
  %v790 = vpop.f32.mrb[0].mxu0
  %791 = vmatprep.mubr.f32.mxu0 0.0
  %792 = vmatmul.mubr.f32.gmra.mrb[0].mxu0 %v124
  %v793 = vpop.f32.mrb[0].mxu0
  %v794 = vadd.f32 %v680, %v793
  %v795 = vpop.f32.mrb[0].mxu0
  %796 = vmatprep.mubr.f32.mxu0 0.0
  %797 = vmatmul.mubr.f32.gmra.mrb[0].mxu0 %v127
  %v798 = vpop.f32.mrb[0].mxu0
  %v799 = vadd.f32 %v680, %v798
  %v800 = vpop.f32.mrb[0].mxu0
  %801 = vmatprep.mubr.f32.mxu0 0.0
  %802 = vmatmul.mubr.f32.gmra.mrb[0].mxu0 %v130
  %v803 = vpop.f32.mrb[0].mxu0
  %v804 = vadd.f32 %v680, %v803
  %v805 = vpop.f32.mrb[0].mxu0
  %806 = vmatprep.mubr.f32.mxu0 0.0
  %807 = vmatmul.mubr.f32.gmra.mrb[0].mxu0 %v133
  %v808 = vpop.f32.mrb[0].mxu0
  %v809 = vadd.f32 %v680, %v808
  %v810 = vpop.f32.mrb[0].mxu0
  %811 = vmatprep.mubr.f32.mxu0 0.0
  %812 = vmatmul.mubr.f32.gmra.mrb[0].mxu0 %v136
  %v813 = vpop.f32.mrb[0].mxu0
  %v814 = vadd.f32 %v680, %v813
  %v815 = vpop.f32.mrb[0].mxu0
  %816 = vmatprep.mubr.f32.mxu0 0.0
  %817 = vmatmul.mubr.f32.gmra.mrb[0].mxu0 %v139
  %v818 = vpop.f32.mrb[0].mxu0
  %v819 = vadd.f32 %v680, %v818
  %v820 = vpop.f32.mrb[0].mxu0
  %821 = vmatprep.mubr.f32.mxu0 0.0
  %822 = vmatmul.mubr.f32.gmra.mrb[0].mxu0 %v142
  %v823 = vpop.f32.mrb[0].mxu0
  %v824 = vadd.f32 %v680, %v823
  %v825 = vpop.f32.mrb[0].mxu0
  %826 = vmatprep.mubr.f32.mxu0 0.0
  %827 = vmatmul.mubr.f32.gmra.mrb[0].mxu0 %v145
  %v828 = vpop.f32.mrb[0].mxu0
  %v829 = vadd.f32 %v680, %v828
  %v830 = vpop.f32.mrb[0].mxu0
  %831 = vmatprep.mubr.f32.mxu0 0.0
  %832 = vmatmul.mubr.f32.gmra.mrb[0].mxu0 %v148
  %v833 = vpop.f32.mrb[0].mxu0
  %v834 = vadd.f32 %v680, %v833
  %v835 = vpop.f32.mrb[0].mxu0
  %836 = vmatprep.mubr.f32.mxu0 0.0
  %837 = vmatmul.mubr.f32.gmra.mrb[0].mxu0 %v151
  %v838 = vpop.f32.mrb[0].mxu0
  %v839 = vadd.f32 %v680, %v838
  %v840 = vpop.f32.mrb[0].mxu0
  %841 = vmatprep.mubr.f32.mxu0 0.0
  %842 = vmatmul.mubr.f32.gmra.mrb[0].mxu0 %v154
  %v843 = vpop.f32.mrb[0].mxu0
  %v844 = vadd.f32 %v680, %v843
  %v845 = vpop.f32.mrb[0].mxu0
  %846 = vmatprep.mubr.f32.mxu0 0.0
  %847 = vmatmul.mubr.f32.gmra.mrb[0].mxu0 %v157
  %v848 = vpop.f32.mrb[0].mxu0
  %v849 = vadd.f32 %v680, %v848
  %v850 = vpop.f32.mrb[0].mxu0
  %851 = vmatprep.mubr.f32.mxu0 0.0
  %852 = vmatmul.mubr.f32.gmra.mrb[0].mxu0 %v160
  %v853 = vpop.f32.mrb[0].mxu0
  %v854 = vadd.f32 %v680, %v853
  %v855 = vpop.f32.mrb[0].mxu0
  %856 = vmatprep.mubr.f32.mxu0 0.0
  %857 = vmatmul.mubr.f32.gmra.mrb[0].mxu0 %v163
  %v858 = vpop.f32.mrb[0].mxu0
  %v859 = vadd.f32 %v680, %v858
  %v860 = vpop.f32.mrb[0].mxu0
  %861 = vmatprep.mubr.f32.mxu0 0.0
  %862 = vmatmul.mubr.f32.gmra.mrb[0].mxu0 %v166
  %v863 = vpop.f32.mrb[0].mxu0
  %v864 = vadd.f32 %v680, %v863
  %v865 = vpop.f32.mrb[0].mxu0
  %866 = vmatprep.mubr.f32.mxu0 0.0
  %867 = vmatmul.mubr.f32.gmra.mrb[0].mxu0 %v169
  %v868 = vpop.f32.mrb[0].mxu0
  %v869 = vadd.f32 %v680, %v868
  %v870 = vpop.f32.mrb[0].mxu0
  %871 = vmatprep.mubr.f32.mxu0 0.0
  %872 = vmatmul.mubr.f32.gmra.mrb[0].mxu0 %v172
  %v873 = vpop.f32.mrb[0].mxu0
  %v874 = vadd.f32 %v680, %v873
  %v875 = vpop.f32.mrb[0].mxu0
  %876 = vmatprep.mubr.f32.mxu0 0.0
  %877 = vmatmul.mubr.f32.gmra.mrb[0].mxu0 %v175
  %v878 = vpop.f32.mrb[0].mxu0
  %v879 = vadd.f32 %v680, %v878
  %v880 = vpop.f32.mrb[0].mxu0
  %881 = vmatprep.mubr.f32.mxu0 0.0
  %882 = vmatmul.mubr.f32.gmra.mrb[0].mxu0 %v178
  %v883 = vpop.f32.mrb[0].mxu0
  %v884 = vadd.f32 %v680, %v883
  %v885 = vpop.f32.mrb[0].mxu0
  %886 = vmatprep.mubr.f32.mxu0 0.0
  %887 = vmatmul.mubr.f32.gmra.mrb[0].mxu0 %v181
  %v888 = vpop.f32.mrb[0].mxu0
  %v889 = vadd.f32 %v680, %v888
  %v890 = vpop.f32.mrb[0].mxu0
  %891 = vmatprep.mubr.f32.mxu0 0.0
  %892 = vmatmul.mubr.f32.gmra.mrb[0].mxu0 %v184
  %v893 = vpop.f32.mrb[0].mxu0
  %v894 = vadd.f32 %v680, %v893
  %v895 = vpop.f32.mrb[0].mxu0
  %896 = vmatprep.mubr.f32.mxu0 0.0
  %897 = vmatmul.mubr.f32.gmra.mrb[0].mxu0 %v187
  %v898 = vpop.f32.mrb[0].mxu0
  %v899 = vadd.f32 %v680, %v898
  %v900 = vpop.f32.mrb[0].mxu0
  %901 = vmatprep.mubr.f32.mxu0 0.0
  %902 = vmatmul.mubr.f32.gmra.mrb[0].mxu0 %v190
  %v903 = vpop.f32.mrb[0].mxu0
  %v904 = vadd.f32 %v680, %v903
  %v905 = vpop.f32.mrb[0].mxu0
  %906 = vmatprep.mubr.f32.mxu0 0.0
  %907 = vmatmul.mubr.f32.gmra.mrb[0].mxu0 %v193
  %v908 = vpop.f32.mrb[0].mxu0
  %v909 = vadd.f32 %v680, %v908
  %v910 = vpop.f32.mrb[0].mxu0
  %911 = vmatprep.mubr.f32.mxu0 0.0
  %912 = vmatmul.mubr.f32.gmra.mrb[0].mxu0 %v196
  %v913 = vpop.f32.mrb[0].mxu0
  %v914 = vadd.f32 %v680, %v913
  %v915 = vpop.f32.mrb[0].mxu0
  %916 = vmatprep.mubr.f32.mxu0 0.0
  %917 = vmatmul.mubr.f32.gmra.mrb[0].mxu0 %v199
  %v918 = vpop.f32.mrb[0].mxu0
  %v919 = vadd.f32 %v680, %v918
  %v920 = vpop.f32.mrb[0].mxu0
  %921 = vmatprep.mubr.f32.mxu0 0.0
  %922 = vmatmul.mubr.f32.gmra.mrb[0].mxu0 %v202
  %v923 = vpop.f32.mrb[0].mxu0
  %v924 = vadd.f32 %v680, %v923
  %v925 = vpop.f32.mrb[0].mxu0
  %926 = vmatprep.mubr.f32.mxu0 0.0
  %927 = vmatmul.mubr.f32.gmra.mrb[0].mxu0 %v205
  %v928 = vpop.f32.mrb[0].mxu0
  %v929 = vadd.f32 %v680, %v928
  %v930 = vpop.f32.mrb[0].mxu0
  %931 = vmatprep.mubr.f32.mxu0 0.0
  %932 = vmatmul.mubr.f32.gmra.mrb[0].mxu0 %v208
  %v933 = vpop.f32.mrb[0].mxu0
  %v934 = vadd.f32 %v680, %v933
  %v935 = vpop.f32.mrb[0].mxu0
  %936 = vmatprep.mubr.f32.mxu0 0.0
  %937 = vmatmul.mubr.f32.gmra.mrb[0].mxu0 %v211
  %v938 = vpop.f32.mrb[0].mxu0
  %v939 = vadd.f32 %v680, %v938
  %v940 = vpop.f32.mrb[0].mxu0
  %941 = vmatprep.mubr.f32.mxu0 0.0
  %942 = vmatmul.mubr.f32.gmra.mrb[0].mxu0 %v214
  %v943 = vpop.f32.mrb[0].mxu0
  %v944 = vadd.f32 %v680, %v943
  %v945 = vpop.f32.mrb[0].mxu0
  %946 = vmatprep.mubr.f32.mxu0 0.0
  %947 = vmatmul.mubr.f32.gmra.mrb[0].mxu0 %v217
  %v948 = vpop.f32.mrb[0].mxu0
  %v949 = vadd.f32 %v680, %v948
  %v950 = vpop.f32.mrb[0].mxu0
  %951 = vmatprep.mubr.f32.mxu0 0.0
  %952 = vmatmul.mubr.f32.gmra.mrb[0].mxu0 %v220
  %v953 = vpop.f32.mrb[0].mxu0
  %v954 = vadd.f32 %v680, %v953
  %v955 = vpop.f32.mrb[0].mxu0
  %956 = vmatprep.mubr.f32.mxu0 0.0
  %957 = vmatmul.mubr.f32.gmra.mrb[0].mxu0 %v223
  %v958 = vpop.f32.mrb[0].mxu0
  %v959 = vadd.f32 %v680, %v958
  %v960 = vpop.f32.mrb[0].mxu0
  %961 = vmatprep.mubr.f32.mxu0 0.0
  %962 = vmatmul.mubr.f32.gmra.mrb[0].mxu0 %v226
  %v963 = vpop.f32.mrb[0].mxu0
  %v964 = vadd.f32 %v680, %v963
  %v965 = vpop.f32.mrb[0].mxu0
  %966 = vmatprep.mubr.f32.mxu0 0.0
  %967 = vmatmul.mubr.f32.gmra.mrb[0].mxu0 %v229
  %v968 = vpop.f32.mrb[0].mxu0
  %v969 = vadd.f32 %v680, %v968
  %v970 = vpop.f32.mrb[0].mxu0
  %971 = vmatprep.mubr.f32.mxu0 0.0
  %972 = vmatmul.mubr.f32.gmra.mrb[0].mxu0 %v232
  %v973 = vpop.f32.mrb[0].mxu0
  %v974 = vadd.f32 %v680, %v973
  %v975 = vpop.f32.mrb[0].mxu0
  %976 = vmatprep.mubr.f32.mxu0 0.0
  %977 = vmatmul.mubr.f32.gmra.mrb[0].mxu0 %v235
  %v978 = vpop.f32.mrb[0].mxu0
  %v979 = vadd.f32 %v680, %v978
  %v980 = vpop.f32.mrb[0].mxu0
  %981 = vmatprep.mubr.f32.mxu0 0.0
  %982 = vmatmul.mubr.f32.gmra.mrb[0].mxu0 %v238
  %v983 = vpop.f32.mrb[0].mxu0
  %v984 = vadd.f32 %v680, %v983
  %v985 = vpop.f32.mrb[0].mxu0
  %986 = vmatprep.mubr.f32.mxu0 0.0
  %987 = vmatmul.mubr.f32.gmra.mrb[0].mxu0 %v241
  %v988 = vpop.f32.mrb[0].mxu0
  %v989 = vadd.f32 %v680, %v988
  %v990 = vpop.f32.mrb[0].mxu0
  %991 = vmatprep.mubr.f32.mxu0 0.0
  %992 = vmatmul.mubr.f32.gmra.mrb[0].mxu0 %v244
  %v993 = vpop.f32.mrb[0].mxu0
  %v994 = vadd.f32 %v680, %v993
  %v995 = vpop.f32.mrb[0].mxu0
  %996 = vmatprep.mubr.f32.mxu0 0.0
  %997 = vmatmul.mubr.f32.gmra.mrb[0].mxu0 %v247
  %v998 = vpop.f32.mrb[0].mxu0
  %v999 = vadd.f32 %v680, %v998
  %v1000 = vpop.f32.mrb[0].mxu0
  %1001 = vmatprep.mubr.f32.mxu0 0.0
  %1002 = vmatmul.mubr.f32.gmra.mrb[0].mxu0 %v250
  %v1003 = vpop.f32.mrb[0].mxu0
  %v1004 = vadd.f32 %v680, %v1003
  %v1005 = vpop.f32.mrb[0].mxu0
  %1006 = vmatprep.mubr.f32.mxu0 0.0
  %1007 = vmatmul.mubr.f32.gmra.mrb[0].mxu0 %v253
  %v1008 = vpop.f32.mrb[0].mxu0
  %v1009 = vadd.f32 %v680, %v1008
  %v1010 = vpop.f32.mrb[0].mxu0
  %1011 = vmatprep.mubr.f32.mxu0 0.0
  %1012 = vmatmul.mubr.f32.gmra.mrb[0].mxu0 %v256
  %v1013 = vpop.f32.mrb[0].mxu0
  %v1014 = vadd.f32 %v680, %v1013
  %v1015 = vpop.f32.mrb[0].mxu0
  %1016 = vmatprep.mubr.f32.mxu0 0.0
  %1017 = vmatmul.mubr.f32.gmra.mrb[0].mxu0 %v259
  %v1018 = vpop.f32.mrb[0].mxu0
  %v1019 = vadd.f32 %v680, %v1018
  %v1020 = vpop.f32.mrb[0].mxu0
  %1021 = vmatprep.mubr.f32.mxu0 0.0
  %1022 = vmatmul.mubr.f32.gmra.mrb[0].mxu0 %v262
  %v1023 = vpop.f32.mrb[0].mxu0
  %v1024 = vadd.f32 %v680, %v1023
  %v1025 = vpop.f32.mrb[0].mxu0
  %1026 = vmatprep.mubr.f32.mxu0 0.0
  %1027 = vmatmul.mubr.f32.gmra.mrb[0].mxu0 %v265
  %v1028 = vpop.f32.mrb[0].mxu0
  %v1029 = vadd.f32 %v680, %v1028
  %v1030 = vpop.f32.mrb[0].mxu0
  %1031 = vmatprep.mubr.f32.mxu0 0.0
  %1032 = vmatmul.mubr.f32.gmra.mrb[0].mxu0 %v268
  %v1033 = vpop.f32.mrb[0].mxu0
  %v1034 = vadd.f32 %v680, %v1033
  %v1035 = vpop.f32.mrb[0].mxu0
  %1036 = vmatprep.mubr.f32.mxu0 0.0
  %1037 = vmatmul.mubr.f32.gmra.mrb[0].mxu0 %v271
  %v1038 = vpop.f32.mrb[0].mxu0
  %v1039 = vadd.f32 %v680, %v1038
  %v1040 = vpop.f32.mrb[0].mxu0
  %1041 = vmatprep.mubr.f32.mxu0 0.0
  %1042 = vmatmul.mubr.f32.gmra.mrb[0].mxu0 %v274
  %v1043 = vpop.f32.mrb[0].mxu0
  %v1044 = vadd.f32 %v680, %v1043
  %v1045 = vpop.f32.mrb[0].mxu0
  %1046 = vmatprep.mubr.f32.mxu0 0.0
  %1047 = vmatmul.mubr.f32.gmra.mrb[0].mxu0 %v277
  %v1048 = vpop.f32.mrb[0].mxu0
  %v1049 = vadd.f32 %v680, %v1048
  %v1050 = vpop.f32.mrb[0].mxu0
  %1051 = vmatprep.mubr.f32.mxu0 0.0
  %1052 = vmatmul.mubr.f32.gmra.mrb[0].mxu0 %v280
  %v1053 = vpop.f32.mrb[0].mxu0
  %v1054 = vadd.f32 %v680, %v1053
  %v1055 = vpop.f32.mrb[0].mxu0
  %1056 = vmatprep.mubr.f32.mxu0 0.0
  %1057 = vmatmul.mubr.f32.gmra.mrb[0].mxu0 %v283
  %v1058 = vpop.f32.mrb[0].mxu0
  %v1059 = vadd.f32 %v680, %v1058
  %v1060 = vpop.f32.mrb[0].mxu0
  %1061 = vmatprep.mubr.f32.mxu0 0.0
  %1062 = vmatmul.mubr.f32.gmra.mrb[0].mxu0 %v286
  %v1063 = vpop.f32.mrb[0].mxu0
  %v1064 = vadd.f32 %v680, %v1063
  %v1065 = vpop.f32.mrb[0].mxu0
  %1066 = vdwg.mxu0
  %v1067 = vxor.u32 %v355, 2147483648
  %v1068 = vxor.u32 %v360, 2147483648
  %v1069 = vxor.u32 %v365, 2147483648
  %v1070 = vxor.u32 %v370, 2147483648
  %v1071 = vxor.u32 %v375, 2147483648
  %v1072 = vxor.u32 %v380, 2147483648
  %v1073 = vxor.u32 %v385, 2147483648
  %v1074 = vxor.u32 %v390, 2147483648
  %v1075 = vxor.u32 %v395, 2147483648
  %v1076 = vxor.u32 %v400, 2147483648
  %v1077 = vxor.u32 %v405, 2147483648
  %v1078 = vxor.u32 %v410, 2147483648
  %v1079 = vxor.u32 %v415, 2147483648
  %v1080 = vxor.u32 %v420, 2147483648
  %v1081 = vxor.u32 %v425, 2147483648
  %v1082 = vxor.u32 %v430, 2147483648
  %v1083 = vxor.u32 %v435, 2147483648
  %v1084 = vxor.u32 %v440, 2147483648
  %v1085 = vxor.u32 %v445, 2147483648
  %v1086 = vxor.u32 %v450, 2147483648
  %v1087 = vxor.u32 %v455, 2147483648
  %v1088 = vxor.u32 %v460, 2147483648
  %v1089 = vxor.u32 %v465, 2147483648
  %v1090 = vxor.u32 %v470, 2147483648
  %v1091 = vxor.u32 %v475, 2147483648
  %v1092 = vxor.u32 %v480, 2147483648
  %v1093 = vxor.u32 %v485, 2147483648
  %v1094 = vxor.u32 %v490, 2147483648
  %v1095 = vxor.u32 %v495, 2147483648
  %v1096 = vxor.u32 %v500, 2147483648
  %v1097 = vxor.u32 %v505, 2147483648
  %v1098 = vxor.u32 %v510, 2147483648
  %v1099 = vxor.u32 %v515, 2147483648
  %v1100 = vxor.u32 %v520, 2147483648
  %v1101 = vxor.u32 %v525, 2147483648
  %v1102 = vxor.u32 %v530, 2147483648
  %v1103 = vxor.u32 %v535, 2147483648
  %v1104 = vxor.u32 %v540, 2147483648
  %v1105 = vxor.u32 %v545, 2147483648
  %v1106 = vxor.u32 %v550, 2147483648
  %v1107 = vxor.u32 %v555, 2147483648
  %v1108 = vxor.u32 %v560, 2147483648
  %v1109 = vxor.u32 %v565, 2147483648
  %v1110 = vxor.u32 %v570, 2147483648
  %v1111 = vxor.u32 %v575, 2147483648
  %v1112 = vxor.u32 %v580, 2147483648
  %v1113 = vxor.u32 %v585, 2147483648
  %v1114 = vxor.u32 %v590, 2147483648
  %v1115 = vxor.u32 %v595, 2147483648
  %v1116 = vxor.u32 %v600, 2147483648
  %v1117 = vxor.u32 %v605, 2147483648
  %v1118 = vxor.u32 %v610, 2147483648
  %v1119 = vxor.u32 %v615, 2147483648
  %v1120 = vxor.u32 %v620, 2147483648
  %v1121 = vxor.u32 %v625, 2147483648
  %v1122 = vxor.u32 %v630, 2147483648
  %v1123 = vxor.u32 %v635, 2147483648
  %v1124 = vxor.u32 %v640, 2147483648
  %v1125 = vxor.u32 %v645, 2147483648
  %v1126 = vxor.u32 %v650, 2147483648
  %v1127 = vxor.u32 %v655, 2147483648
  %v1128 = vxor.u32 %v660, 2147483648
  %v1129 = vxor.u32 %v665, 2147483648
  %v1130 = vxor.u32 %v670, 2147483648
  %v1131 = vmul.f32 %v1067, 1.442695
  %v1132 = vpow.pop %v1131
  %v1133 = vmul.f32 %v1068, 1.442695
  %v1134 = vpow.pop %v1133
  %v1135 = vmul.f32 %v1069, 1.442695
  %v1136 = vpow.pop %v1135
  %v1137 = vmul.f32 %v1070, 1.442695
  %v1138 = vpow.pop %v1137
  %v1139 = vmul.f32 %v1071, 1.442695
  %v1140 = vpow.pop %v1139
  %v1141 = vmul.f32 %v1072, 1.442695
  %v1142 = vpow.pop %v1141
  %v1143 = vmul.f32 %v1073, 1.442695
  %v1144 = vpow.pop %v1143
  %v1145 = vmul.f32 %v1074, 1.442695
  %v1146 = vpow.pop %v1145
  %v1147 = vmul.f32 %v1075, 1.442695
  %v1148 = vpow.pop %v1147
  %v1149 = vmul.f32 %v1076, 1.442695
  %v1150 = vpow.pop %v1149
  %v1151 = vmul.f32 %v1077, 1.442695
  %v1152 = vpow.pop %v1151
  %v1153 = vmul.f32 %v1078, 1.442695
  %v1154 = vpow.pop %v1153
  %v1155 = vmul.f32 %v1079, 1.442695
  %v1156 = vpow.pop %v1155
  %v1157 = vmul.f32 %v1080, 1.442695
  %v1158 = vpow.pop %v1157
  %v1159 = vmul.f32 %v1081, 1.442695
  %v1160 = vpow.pop %v1159
  %v1161 = vmul.f32 %v1082, 1.442695
  %v1162 = vpow.pop %v1161
  %v1163 = vmul.f32 %v1083, 1.442695
  %v1164 = vpow.pop %v1163
  %v1165 = vmul.f32 %v1084, 1.442695
  %v1166 = vpow.pop %v1165
  %v1167 = vmul.f32 %v1085, 1.442695
  %v1168 = vpow.pop %v1167
  %v1169 = vmul.f32 %v1086, 1.442695
  %v1170 = vpow.pop %v1169
  %v1171 = vmul.f32 %v1087, 1.442695
  %v1172 = vpow.pop %v1171
  %v1173 = vmul.f32 %v1088, 1.442695
  %v1174 = vpow.pop %v1173
  %v1175 = vmul.f32 %v1089, 1.442695
  %v1176 = vpow.pop %v1175
  %v1177 = vmul.f32 %v1090, 1.442695
  %v1178 = vpow.pop %v1177
  %v1179 = vmul.f32 %v1091, 1.442695
  %v1180 = vpow.pop %v1179
  %v1181 = vmul.f32 %v1092, 1.442695
  %v1182 = vpow.pop %v1181
  %v1183 = vmul.f32 %v1093, 1.442695
  %v1184 = vpow.pop %v1183
  %v1185 = vmul.f32 %v1094, 1.442695
  %v1186 = vpow.pop %v1185
  %v1187 = vmul.f32 %v1095, 1.442695
  %v1188 = vpow.pop %v1187
  %v1189 = vmul.f32 %v1096, 1.442695
  %v1190 = vpow.pop %v1189
  %v1191 = vmul.f32 %v1097, 1.442695
  %v1192 = vpow.pop %v1191
  %v1193 = vmul.f32 %v1098, 1.442695
  %v1194 = vpow.pop %v1193
  %v1195 = vmul.f32 %v1099, 1.442695
  %v1196 = vpow.pop %v1195
  %v1197 = vmul.f32 %v1100, 1.442695
  %v1198 = vpow.pop %v1197
  %v1199 = vmul.f32 %v1101, 1.442695
  %v1200 = vpow.pop %v1199
  %v1201 = vmul.f32 %v1102, 1.442695
  %v1202 = vpow.pop %v1201
  %v1203 = vmul.f32 %v1103, 1.442695
  %v1204 = vpow.pop %v1203
  %v1205 = vmul.f32 %v1104, 1.442695
  %v1206 = vpow.pop %v1205
  %v1207 = vmul.f32 %v1105, 1.442695
  %v1208 = vpow.pop %v1207
  %v1209 = vmul.f32 %v1106, 1.442695
  %v1210 = vpow.pop %v1209
  %v1211 = vmul.f32 %v1107, 1.442695
  %v1212 = vpow.pop %v1211
  %v1213 = vmul.f32 %v1108, 1.442695
  %v1214 = vpow.pop %v1213
  %v1215 = vmul.f32 %v1109, 1.442695
  %v1216 = vpow.pop %v1215
  %v1217 = vmul.f32 %v1110, 1.442695
  %v1218 = vpow.pop %v1217
  %v1219 = vmul.f32 %v1111, 1.442695
  %v1220 = vpow.pop %v1219
  %v1221 = vmul.f32 %v1112, 1.442695
  %v1222 = vpow.pop %v1221
  %v1223 = vmul.f32 %v1113, 1.442695
  %v1224 = vpow.pop %v1223
  %v1225 = vmul.f32 %v1114, 1.442695
  %v1226 = vpow.pop %v1225
  %v1227 = vmul.f32 %v1115, 1.442695
  %v1228 = vpow.pop %v1227
  %v1229 = vmul.f32 %v1116, 1.442695
  %v1230 = vpow.pop %v1229
  %v1231 = vmul.f32 %v1117, 1.442695
  %v1232 = vpow.pop %v1231
  %v1233 = vmul.f32 %v1118, 1.442695
  %v1234 = vpow.pop %v1233
  %v1235 = vmul.f32 %v1119, 1.442695
  %v1236 = vpow.pop %v1235
  %v1237 = vmul.f32 %v1120, 1.442695
  %v1238 = vpow.pop %v1237
  %v1239 = vmul.f32 %v1121, 1.442695
  %v1240 = vpow.pop %v1239
  %v1241 = vmul.f32 %v1122, 1.442695
  %v1242 = vpow.pop %v1241
  %v1243 = vmul.f32 %v1123, 1.442695
  %v1244 = vpow.pop %v1243
  %v1245 = vmul.f32 %v1124, 1.442695
  %v1246 = vpow.pop %v1245
  %v1247 = vmul.f32 %v1125, 1.442695
  %v1248 = vpow.pop %v1247
  %v1249 = vmul.f32 %v1126, 1.442695
  %v1250 = vpow.pop %v1249
  %v1251 = vmul.f32 %v1127, 1.442695
  %v1252 = vpow.pop %v1251
  %v1253 = vmul.f32 %v1128, 1.442695
  %v1254 = vpow.pop %v1253
  %v1255 = vmul.f32 %v1129, 1.442695
  %v1256 = vpow.pop %v1255
  %v1257 = vmul.f32 %v1130, 1.442695
  %v1258 = vpow.pop %v1257
  %v1259 = vadd.f32 %v1132, 1.0
  %v1260 = vadd.f32 %v1134, 1.0
  %v1261 = vadd.f32 %v1136, 1.0
  %v1262 = vadd.f32 %v1138, 1.0
  %v1263 = vadd.f32 %v1140, 1.0
  %v1264 = vadd.f32 %v1142, 1.0
  %v1265 = vadd.f32 %v1144, 1.0
  %v1266 = vadd.f32 %v1146, 1.0
  %v1267 = vadd.f32 %v1148, 1.0
  %v1268 = vadd.f32 %v1150, 1.0
  %v1269 = vadd.f32 %v1152, 1.0
  %v1270 = vadd.f32 %v1154, 1.0
  %v1271 = vadd.f32 %v1156, 1.0
  %v1272 = vadd.f32 %v1158, 1.0
  %v1273 = vadd.f32 %v1160, 1.0
  %v1274 = vadd.f32 %v1162, 1.0
  %v1275 = vadd.f32 %v1164, 1.0
  %v1276 = vadd.f32 %v1166, 1.0
  %v1277 = vadd.f32 %v1168, 1.0
  %v1278 = vadd.f32 %v1170, 1.0
  %v1279 = vadd.f32 %v1172, 1.0
  %v1280 = vadd.f32 %v1174, 1.0
  %v1281 = vadd.f32 %v1176, 1.0
  %v1282 = vadd.f32 %v1178, 1.0
  %v1283 = vadd.f32 %v1180, 1.0
  %v1284 = vadd.f32 %v1182, 1.0
  %v1285 = vadd.f32 %v1184, 1.0
  %v1286 = vadd.f32 %v1186, 1.0
  %v1287 = vadd.f32 %v1188, 1.0
  %v1288 = vadd.f32 %v1190, 1.0
  %v1289 = vadd.f32 %v1192, 1.0
  %v1290 = vadd.f32 %v1194, 1.0
  %v1291 = vadd.f32 %v1196, 1.0
  %v1292 = vadd.f32 %v1198, 1.0
  %v1293 = vadd.f32 %v1200, 1.0
  %v1294 = vadd.f32 %v1202, 1.0
  %v1295 = vadd.f32 %v1204, 1.0
  %v1296 = vadd.f32 %v1206, 1.0
  %v1297 = vadd.f32 %v1208, 1.0
  %v1298 = vadd.f32 %v1210, 1.0
  %v1299 = vadd.f32 %v1212, 1.0
  %v1300 = vadd.f32 %v1214, 1.0
  %v1301 = vadd.f32 %v1216, 1.0
  %v1302 = vadd.f32 %v1218, 1.0
  %v1303 = vadd.f32 %v1220, 1.0
  %v1304 = vadd.f32 %v1222, 1.0
  %v1305 = vadd.f32 %v1224, 1.0
  %v1306 = vadd.f32 %v1226, 1.0
  %v1307 = vadd.f32 %v1228, 1.0
  %v1308 = vadd.f32 %v1230, 1.0
  %v1309 = vadd.f32 %v1232, 1.0
  %v1310 = vadd.f32 %v1234, 1.0
  %v1311 = vadd.f32 %v1236, 1.0
  %v1312 = vadd.f32 %v1238, 1.0
  %v1313 = vadd.f32 %v1240, 1.0
  %v1314 = vadd.f32 %v1242, 1.0
  %v1315 = vadd.f32 %v1244, 1.0
  %v1316 = vadd.f32 %v1246, 1.0
  %v1317 = vadd.f32 %v1248, 1.0
  %v1318 = vadd.f32 %v1250, 1.0
  %v1319 = vadd.f32 %v1252, 1.0
  %v1320 = vadd.f32 %v1254, 1.0
  %v1321 = vadd.f32 %v1256, 1.0
  %v1322 = vadd.f32 %v1258, 1.0
  %v1323 = vrcp.pop %v1259
  %v1324 = vmul.f32 1.0, %v1323
  %v1325 = vrcp.pop %v1260
  %v1326 = vmul.f32 1.0, %v1325
  %v1327 = vrcp.pop %v1261
  %v1328 = vmul.f32 1.0, %v1327
  %v1329 = vrcp.pop %v1262
  %v1330 = vmul.f32 1.0, %v1329
  %v1331 = vrcp.pop %v1263
  %v1332 = vmul.f32 1.0, %v1331
  %v1333 = vrcp.pop %v1264
  %v1334 = vmul.f32 1.0, %v1333
  %v1335 = vrcp.pop %v1265
  %v1336 = vmul.f32 1.0, %v1335
  %v1337 = vrcp.pop %v1266
  %v1338 = vmul.f32 1.0, %v1337
  %v1339 = vrcp.pop %v1267
  %v1340 = vmul.f32 1.0, %v1339
  %v1341 = vrcp.pop %v1268
  %v1342 = vmul.f32 1.0, %v1341
  %v1343 = vrcp.pop %v1269
  %v1344 = vmul.f32 1.0, %v1343
  %v1345 = vrcp.pop %v1270
  %v1346 = vmul.f32 1.0, %v1345
  %v1347 = vrcp.pop %v1271
  %v1348 = vmul.f32 1.0, %v1347
  %v1349 = vrcp.pop %v1272
  %v1350 = vmul.f32 1.0, %v1349
  %v1351 = vrcp.pop %v1273
  %v1352 = vmul.f32 1.0, %v1351
  %v1353 = vrcp.pop %v1274
  %v1354 = vmul.f32 1.0, %v1353
  %v1355 = vrcp.pop %v1275
  %v1356 = vmul.f32 1.0, %v1355
  %v1357 = vrcp.pop %v1276
  %v1358 = vmul.f32 1.0, %v1357
  %v1359 = vrcp.pop %v1277
  %v1360 = vmul.f32 1.0, %v1359
  %v1361 = vrcp.pop %v1278
  %v1362 = vmul.f32 1.0, %v1361
  %v1363 = vrcp.pop %v1279
  %v1364 = vmul.f32 1.0, %v1363
  %v1365 = vrcp.pop %v1280
  %v1366 = vmul.f32 1.0, %v1365
  %v1367 = vrcp.pop %v1281
  %v1368 = vmul.f32 1.0, %v1367
  %v1369 = vrcp.pop %v1282
  %v1370 = vmul.f32 1.0, %v1369
  %v1371 = vrcp.pop %v1283
  %v1372 = vmul.f32 1.0, %v1371
  %v1373 = vrcp.pop %v1284
  %v1374 = vmul.f32 1.0, %v1373
  %v1375 = vrcp.pop %v1285
  %v1376 = vmul.f32 1.0, %v1375
  %v1377 = vrcp.pop %v1286
  %v1378 = vmul.f32 1.0, %v1377
  %v1379 = vrcp.pop %v1287
  %v1380 = vmul.f32 1.0, %v1379
  %v1381 = vrcp.pop %v1288
  %v1382 = vmul.f32 1.0, %v1381
  %v1383 = vrcp.pop %v1289
  %v1384 = vmul.f32 1.0, %v1383
  %v1385 = vrcp.pop %v1290
  %v1386 = vmul.f32 1.0, %v1385
  %v1387 = vrcp.pop %v1291
  %v1388 = vmul.f32 1.0, %v1387
  %v1389 = vrcp.pop %v1292
  %v1390 = vmul.f32 1.0, %v1389
  %v1391 = vrcp.pop %v1293
  %v1392 = vmul.f32 1.0, %v1391
  %v1393 = vrcp.pop %v1294
  %v1394 = vmul.f32 1.0, %v1393
  %v1395 = vrcp.pop %v1295
  %v1396 = vmul.f32 1.0, %v1395
  %v1397 = vrcp.pop %v1296
  %v1398 = vmul.f32 1.0, %v1397
  %v1399 = vrcp.pop %v1297
  %v1400 = vmul.f32 1.0, %v1399
  %v1401 = vrcp.pop %v1298
  %v1402 = vmul.f32 1.0, %v1401
  %v1403 = vrcp.pop %v1299
  %v1404 = vmul.f32 1.0, %v1403
  %v1405 = vrcp.pop %v1300
  %v1406 = vmul.f32 1.0, %v1405
  %v1407 = vrcp.pop %v1301
  %v1408 = vmul.f32 1.0, %v1407
  %v1409 = vrcp.pop %v1302
  %v1410 = vmul.f32 1.0, %v1409
  %v1411 = vrcp.pop %v1303
  %v1412 = vmul.f32 1.0, %v1411
  %v1413 = vrcp.pop %v1304
  %v1414 = vmul.f32 1.0, %v1413
  %v1415 = vrcp.pop %v1305
  %v1416 = vmul.f32 1.0, %v1415
  %v1417 = vrcp.pop %v1306
  %v1418 = vmul.f32 1.0, %v1417
  %v1419 = vrcp.pop %v1307
  %v1420 = vmul.f32 1.0, %v1419
  %v1421 = vrcp.pop %v1308
  %v1422 = vmul.f32 1.0, %v1421
  %v1423 = vrcp.pop %v1309
  %v1424 = vmul.f32 1.0, %v1423
  %v1425 = vrcp.pop %v1310
  %v1426 = vmul.f32 1.0, %v1425
  %v1427 = vrcp.pop %v1311
  %v1428 = vmul.f32 1.0, %v1427
  %v1429 = vrcp.pop %v1312
  %v1430 = vmul.f32 1.0, %v1429
  %v1431 = vrcp.pop %v1313
  %v1432 = vmul.f32 1.0, %v1431
  %v1433 = vrcp.pop %v1314
  %v1434 = vmul.f32 1.0, %v1433
  %v1435 = vrcp.pop %v1315
  %v1436 = vmul.f32 1.0, %v1435
  %v1437 = vrcp.pop %v1316
  %v1438 = vmul.f32 1.0, %v1437
  %v1439 = vrcp.pop %v1317
  %v1440 = vmul.f32 1.0, %v1439
  %v1441 = vrcp.pop %v1318
  %v1442 = vmul.f32 1.0, %v1441
  %v1443 = vrcp.pop %v1319
  %v1444 = vmul.f32 1.0, %v1443
  %v1445 = vrcp.pop %v1320
  %v1446 = vmul.f32 1.0, %v1445
  %v1447 = vrcp.pop %v1321
  %v1448 = vmul.f32 1.0, %v1447
  %v1449 = vrcp.pop %v1322
  %v1450 = vmul.f32 1.0, %v1449
  %v1451 = vmul.f32 %v355, %v1324
  %v1452 = vmul.f32 %v360, %v1326
  %v1453 = vmul.f32 %v365, %v1328
  %v1454 = vmul.f32 %v370, %v1330
  %v1455 = vmul.f32 %v375, %v1332
  %v1456 = vmul.f32 %v380, %v1334
  %v1457 = vmul.f32 %v385, %v1336
  %v1458 = vmul.f32 %v390, %v1338
  %v1459 = vmul.f32 %v395, %v1340
  %v1460 = vmul.f32 %v400, %v1342
  %v1461 = vmul.f32 %v405, %v1344
  %v1462 = vmul.f32 %v410, %v1346
  %v1463 = vmul.f32 %v415, %v1348
  %v1464 = vmul.f32 %v420, %v1350
  %v1465 = vmul.f32 %v425, %v1352
  %v1466 = vmul.f32 %v430, %v1354
  %v1467 = vmul.f32 %v435, %v1356
  %v1468 = vmul.f32 %v440, %v1358
  %v1469 = vmul.f32 %v445, %v1360
  %v1470 = vmul.f32 %v450, %v1362
  %v1471 = vmul.f32 %v455, %v1364
  %v1472 = vmul.f32 %v460, %v1366
  %v1473 = vmul.f32 %v465, %v1368
  %v1474 = vmul.f32 %v470, %v1370
  %v1475 = vmul.f32 %v475, %v1372
  %v1476 = vmul.f32 %v480, %v1374
  %v1477 = vmul.f32 %v485, %v1376
  %v1478 = vmul.f32 %v490, %v1378
  %v1479 = vmul.f32 %v495, %v1380
  %v1480 = vmul.f32 %v500, %v1382
  %v1481 = vmul.f32 %v505, %v1384
  %v1482 = vmul.f32 %v510, %v1386
  %v1483 = vmul.f32 %v515, %v1388
  %v1484 = vmul.f32 %v520, %v1390
  %v1485 = vmul.f32 %v525, %v1392
  %v1486 = vmul.f32 %v530, %v1394
  %v1487 = vmul.f32 %v535, %v1396
  %v1488 = vmul.f32 %v540, %v1398
  %v1489 = vmul.f32 %v545, %v1400
  %v1490 = vmul.f32 %v550, %v1402
  %v1491 = vmul.f32 %v555, %v1404
  %v1492 = vmul.f32 %v560, %v1406
  %v1493 = vmul.f32 %v565, %v1408
  %v1494 = vmul.f32 %v570, %v1410
  %v1495 = vmul.f32 %v575, %v1412
  %v1496 = vmul.f32 %v580, %v1414
  %v1497 = vmul.f32 %v585, %v1416
  %v1498 = vmul.f32 %v590, %v1418
  %v1499 = vmul.f32 %v595, %v1420
  %v1500 = vmul.f32 %v600, %v1422
  %v1501 = vmul.f32 %v605, %v1424
  %v1502 = vmul.f32 %v610, %v1426
  %v1503 = vmul.f32 %v615, %v1428
  %v1504 = vmul.f32 %v620, %v1430
  %v1505 = vmul.f32 %v625, %v1432
  %v1506 = vmul.f32 %v630, %v1434
  %v1507 = vmul.f32 %v635, %v1436
  %v1508 = vmul.f32 %v640, %v1438
  %v1509 = vmul.f32 %v645, %v1440
  %v1510 = vmul.f32 %v650, %v1442
  %v1511 = vmul.f32 %v655, %v1444
  %v1512 = vmul.f32 %v660, %v1446
  %v1513 = vmul.f32 %v665, %v1448
  %v1514 = vmul.f32 %v670, %v1450
  %vm1515 = vcmask 64512
  %1516 = vst.msk [vmem:[%s5] sm:$0xff] %vm1515, %v1451
  %1517 = vst.msk [vmem:[%s5 + $0x8] sm:$0xff] %vm1515, %v1452
  %1518 = vst.msk [vmem:[%s5 + $0x10] sm:$0xff] %vm1515, %v1453
  %1519 = vst.msk [vmem:[%s5 + $0x18] sm:$0xff] %vm1515, %v1454
  %1520 = vst.msk [vmem:[%s5 + $0x20] sm:$0xff] %vm1515, %v1455
  %1521 = vst.msk [vmem:[%s5 + $0x28] sm:$0xff] %vm1515, %v1456
  %1522 = vst.msk [vmem:[%s5 + $0x30] sm:$0xff] %vm1515, %v1457
  %1523 = vst.msk [vmem:[%s5 + $0x38] sm:$0xff] %vm1515, %v1458
  %1524 = vst.msk [vmem:[%s5 + $0x40] sm:$0xff] %vm1515, %v1459
  %1525 = vst.msk [vmem:[%s5 + $0x48] sm:$0xff] %vm1515, %v1460
  %1526 = vst.msk [vmem:[%s5 + $0x50] sm:$0xff] %vm1515, %v1461
  %1527 = vst.msk [vmem:[%s5 + $0x58] sm:$0xff] %vm1515, %v1462
  %1528 = vst.msk [vmem:[%s5 + $0x60] sm:$0xff] %vm1515, %v1463
  %1529 = vst.msk [vmem:[%s5 + $0x68] sm:$0xff] %vm1515, %v1464
  %1530 = vst.msk [vmem:[%s5 + $0x70] sm:$0xff] %vm1515, %v1465
  %1531 = vst.msk [vmem:[%s5 + $0x78] sm:$0xff] %vm1515, %v1466
  %1532 = vst.msk [vmem:[%s5 + $0x80] sm:$0xff] %vm1515, %v1467
  %1533 = vst.msk [vmem:[%s5 + $0x88] sm:$0xff] %vm1515, %v1468
  %1534 = vst.msk [vmem:[%s5 + $0x90] sm:$0xff] %vm1515, %v1469
  %1535 = vst.msk [vmem:[%s5 + $0x98] sm:$0xff] %vm1515, %v1470
  %1536 = vst.msk [vmem:[%s5 + $0xa0] sm:$0xff] %vm1515, %v1471
  %1537 = vst.msk [vmem:[%s5 + $0xa8] sm:$0xff] %vm1515, %v1472
  %1538 = vst.msk [vmem:[%s5 + $0xb0] sm:$0xff] %vm1515, %v1473
  %1539 = vst.msk [vmem:[%s5 + $0xb8] sm:$0xff] %vm1515, %v1474
  %1540 = vst.msk [vmem:[%s5 + $0xc0] sm:$0xff] %vm1515, %v1475
  %1541 = vst.msk [vmem:[%s5 + $0xc8] sm:$0xff] %vm1515, %v1476
  %1542 = vst.msk [vmem:[%s5 + $0xd0] sm:$0xff] %vm1515, %v1477
  %1543 = vst.msk [vmem:[%s5 + $0xd8] sm:$0xff] %vm1515, %v1478
  %1544 = vst.msk [vmem:[%s5 + $0xe0] sm:$0xff] %vm1515, %v1479
  %1545 = vst.msk [vmem:[%s5 + $0xe8] sm:$0xff] %vm1515, %v1480
  %1546 = vst.msk [vmem:[%s5 + $0xf0] sm:$0xff] %vm1515, %v1481
  %1547 = vst.msk [vmem:[%s5 + $0xf8] sm:$0xff] %vm1515, %v1482
  %1548 = vst.msk [vmem:[%s5 + $0x100] sm:$0xff] %vm1515, %v1483
  %1549 = vst.msk [vmem:[%s5 + $0x108] sm:$0xff] %vm1515, %v1484
  %1550 = vst.msk [vmem:[%s5 + $0x110] sm:$0xff] %vm1515, %v1485
  %1551 = vst.msk [vmem:[%s5 + $0x118] sm:$0xff] %vm1515, %v1486
  %1552 = vst.msk [vmem:[%s5 + $0x120] sm:$0xff] %vm1515, %v1487
  %1553 = vst.msk [vmem:[%s5 + $0x128] sm:$0xff] %vm1515, %v1488
  %1554 = vst.msk [vmem:[%s5 + $0x130] sm:$0xff] %vm1515, %v1489
  %1555 = vst.msk [vmem:[%s5 + $0x138] sm:$0xff] %vm1515, %v1490
  %1556 = vst.msk [vmem:[%s5 + $0x140] sm:$0xff] %vm1515, %v1491
  %1557 = vst.msk [vmem:[%s5 + $0x148] sm:$0xff] %vm1515, %v1492
  %1558 = vst.msk [vmem:[%s5 + $0x150] sm:$0xff] %vm1515, %v1493
  %1559 = vst.msk [vmem:[%s5 + $0x158] sm:$0xff] %vm1515, %v1494
  %1560 = vst.msk [vmem:[%s5 + $0x160] sm:$0xff] %vm1515, %v1495
  %1561 = vst.msk [vmem:[%s5 + $0x168] sm:$0xff] %vm1515, %v1496
  %1562 = vst.msk [vmem:[%s5 + $0x170] sm:$0xff] %vm1515, %v1497
  %1563 = vst.msk [vmem:[%s5 + $0x178] sm:$0xff] %vm1515, %v1498
  %1564 = vst.msk [vmem:[%s5 + $0x180] sm:$0xff] %vm1515, %v1499
  %1565 = vst.msk [vmem:[%s5 + $0x188] sm:$0xff] %vm1515, %v1500
  %1566 = vst.msk [vmem:[%s5 + $0x190] sm:$0xff] %vm1515, %v1501
  %1567 = vst.msk [vmem:[%s5 + $0x198] sm:$0xff] %vm1515, %v1502
  %1568 = vst.msk [vmem:[%s5 + $0x1a0] sm:$0xff] %vm1515, %v1503
  %1569 = vst.msk [vmem:[%s5 + $0x1a8] sm:$0xff] %vm1515, %v1504
  %1570 = vst.msk [vmem:[%s5 + $0x1b0] sm:$0xff] %vm1515, %v1505
  %1571 = vst.msk [vmem:[%s5 + $0x1b8] sm:$0xff] %vm1515, %v1506
  %1572 = vst.msk [vmem:[%s5 + $0x1c0] sm:$0xff] %vm1515, %v1507
  %1573 = vst.msk [vmem:[%s5 + $0x1c8] sm:$0xff] %vm1515, %v1508
  %1574 = vst.msk [vmem:[%s5 + $0x1d0] sm:$0xff] %vm1515, %v1509
  %1575 = vst.msk [vmem:[%s5 + $0x1d8] sm:$0xff] %vm1515, %v1510
  %1576 = vst.msk [vmem:[%s5 + $0x1e0] sm:$0xff] %vm1515, %v1511
  %1577 = vst.msk [vmem:[%s5 + $0x1e8] sm:$0xff] %vm1515, %v1512
  %1578 = vst.msk [vmem:[%s5 + $0x1f0] sm:$0xff] %vm1515, %v1513
  %1579 = vst.msk [vmem:[%s5 + $0x1f8] sm:$0xff] %vm1515, %v1514
  %v1580 = vxor.u32 %v749, 2147483648
  %v1581 = vxor.u32 %v754, 2147483648
  %v1582 = vxor.u32 %v759, 2147483648
  %v1583 = vxor.u32 %v764, 2147483648
  %v1584 = vxor.u32 %v769, 2147483648
  %v1585 = vxor.u32 %v774, 2147483648
  %v1586 = vxor.u32 %v779, 2147483648
  %v1587 = vxor.u32 %v784, 2147483648
  %v1588 = vxor.u32 %v789, 2147483648
  %v1589 = vxor.u32 %v794, 2147483648
  %v1590 = vxor.u32 %v799, 2147483648
  %v1591 = vxor.u32 %v804, 2147483648
  %v1592 = vxor.u32 %v809, 2147483648
  %v1593 = vxor.u32 %v814, 2147483648
  %v1594 = vxor.u32 %v819, 2147483648
  %v1595 = vxor.u32 %v824, 2147483648
  %v1596 = vxor.u32 %v829, 2147483648
  %v1597 = vxor.u32 %v834, 2147483648
  %v1598 = vxor.u32 %v839, 2147483648
  %v1599 = vxor.u32 %v844, 2147483648
  %v1600 = vxor.u32 %v849, 2147483648
  %v1601 = vxor.u32 %v854, 2147483648
  %v1602 = vxor.u32 %v859, 2147483648
  %v1603 = vxor.u32 %v864, 2147483648
  %v1604 = vxor.u32 %v869, 2147483648
  %v1605 = vxor.u32 %v874, 2147483648
  %v1606 = vxor.u32 %v879, 2147483648
  %v1607 = vxor.u32 %v884, 2147483648
  %v1608 = vxor.u32 %v889, 2147483648
  %v1609 = vxor.u32 %v894, 2147483648
  %v1610 = vxor.u32 %v899, 2147483648
  %v1611 = vxor.u32 %v904, 2147483648
  %v1612 = vxor.u32 %v909, 2147483648
  %v1613 = vxor.u32 %v914, 2147483648
  %v1614 = vxor.u32 %v919, 2147483648
  %v1615 = vxor.u32 %v924, 2147483648
  %v1616 = vxor.u32 %v929, 2147483648
  %v1617 = vxor.u32 %v934, 2147483648
  %v1618 = vxor.u32 %v939, 2147483648
  %v1619 = vxor.u32 %v944, 2147483648
  %v1620 = vxor.u32 %v949, 2147483648
  %v1621 = vxor.u32 %v954, 2147483648
  %v1622 = vxor.u32 %v959, 2147483648
  %v1623 = vxor.u32 %v964, 2147483648
  %v1624 = vxor.u32 %v969, 2147483648
  %v1625 = vxor.u32 %v974, 2147483648
  %v1626 = vxor.u32 %v979, 2147483648
  %v1627 = vxor.u32 %v984, 2147483648
  %v1628 = vxor.u32 %v989, 2147483648
  %v1629 = vxor.u32 %v994, 2147483648
  %v1630 = vxor.u32 %v999, 2147483648
  %v1631 = vxor.u32 %v1004, 2147483648
  %v1632 = vxor.u32 %v1009, 2147483648
  %v1633 = vxor.u32 %v1014, 2147483648
  %v1634 = vxor.u32 %v1019, 2147483648
  %v1635 = vxor.u32 %v1024, 2147483648
  %v1636 = vxor.u32 %v1029, 2147483648
  %v1637 = vxor.u32 %v1034, 2147483648
  %v1638 = vxor.u32 %v1039, 2147483648
  %v1639 = vxor.u32 %v1044, 2147483648
  %v1640 = vxor.u32 %v1049, 2147483648
  %v1641 = vxor.u32 %v1054, 2147483648
  %v1642 = vxor.u32 %v1059, 2147483648
  %v1643 = vxor.u32 %v1064, 2147483648
  %v1644 = vmul.f32 %v1580, 1.442695
  %v1645 = vpow.pop %v1644
  %v1646 = vmul.f32 %v1581, 1.442695
  %v1647 = vpow.pop %v1646
  %v1648 = vmul.f32 %v1582, 1.442695
  %v1649 = vpow.pop %v1648
  %v1650 = vmul.f32 %v1583, 1.442695
  %v1651 = vpow.pop %v1650
  %v1652 = vmul.f32 %v1584, 1.442695
  %v1653 = vpow.pop %v1652
  %v1654 = vmul.f32 %v1585, 1.442695
  %v1655 = vpow.pop %v1654
  %v1656 = vmul.f32 %v1586, 1.442695
  %v1657 = vpow.pop %v1656
  %v1658 = vmul.f32 %v1587, 1.442695
  %v1659 = vpow.pop %v1658
  %v1660 = vmul.f32 %v1588, 1.442695
  %v1661 = vpow.pop %v1660
  %v1662 = vmul.f32 %v1589, 1.442695
  %v1663 = vpow.pop %v1662
  %v1664 = vmul.f32 %v1590, 1.442695
  %v1665 = vpow.pop %v1664
  %v1666 = vmul.f32 %v1591, 1.442695
  %v1667 = vpow.pop %v1666
  %v1668 = vmul.f32 %v1592, 1.442695
  %v1669 = vpow.pop %v1668
  %v1670 = vmul.f32 %v1593, 1.442695
  %v1671 = vpow.pop %v1670
  %v1672 = vmul.f32 %v1594, 1.442695
  %v1673 = vpow.pop %v1672
  %v1674 = vmul.f32 %v1595, 1.442695
  %v1675 = vpow.pop %v1674
  %v1676 = vmul.f32 %v1596, 1.442695
  %v1677 = vpow.pop %v1676
  %v1678 = vmul.f32 %v1597, 1.442695
  %v1679 = vpow.pop %v1678
  %v1680 = vmul.f32 %v1598, 1.442695
  %v1681 = vpow.pop %v1680
  %v1682 = vmul.f32 %v1599, 1.442695
  %v1683 = vpow.pop %v1682
  %v1684 = vmul.f32 %v1600, 1.442695
  %v1685 = vpow.pop %v1684
  %v1686 = vmul.f32 %v1601, 1.442695
  %v1687 = vpow.pop %v1686
  %v1688 = vmul.f32 %v1602, 1.442695
  %v1689 = vpow.pop %v1688
  %v1690 = vmul.f32 %v1603, 1.442695
  %v1691 = vpow.pop %v1690
  %v1692 = vmul.f32 %v1604, 1.442695
  %v1693 = vpow.pop %v1692
  %v1694 = vmul.f32 %v1605, 1.442695
  %v1695 = vpow.pop %v1694
  %v1696 = vmul.f32 %v1606, 1.442695
  %v1697 = vpow.pop %v1696
  %v1698 = vmul.f32 %v1607, 1.442695
  %v1699 = vpow.pop %v1698
  %v1700 = vmul.f32 %v1608, 1.442695
  %v1701 = vpow.pop %v1700
  %v1702 = vmul.f32 %v1609, 1.442695
  %v1703 = vpow.pop %v1702
  %v1704 = vmul.f32 %v1610, 1.442695
  %v1705 = vpow.pop %v1704
  %v1706 = vmul.f32 %v1611, 1.442695
  %v1707 = vpow.pop %v1706
  %v1708 = vmul.f32 %v1612, 1.442695
  %v1709 = vpow.pop %v1708
  %v1710 = vmul.f32 %v1613, 1.442695
  %v1711 = vpow.pop %v1710
  %v1712 = vmul.f32 %v1614, 1.442695
  %v1713 = vpow.pop %v1712
  %v1714 = vmul.f32 %v1615, 1.442695
  %v1715 = vpow.pop %v1714
  %v1716 = vmul.f32 %v1616, 1.442695
  %v1717 = vpow.pop %v1716
  %v1718 = vmul.f32 %v1617, 1.442695
  %v1719 = vpow.pop %v1718
  %v1720 = vmul.f32 %v1618, 1.442695
  %v1721 = vpow.pop %v1720
  %v1722 = vmul.f32 %v1619, 1.442695
  %v1723 = vpow.pop %v1722
  %v1724 = vmul.f32 %v1620, 1.442695
  %v1725 = vpow.pop %v1724
  %v1726 = vmul.f32 %v1621, 1.442695
  %v1727 = vpow.pop %v1726
  %v1728 = vmul.f32 %v1622, 1.442695
  %v1729 = vpow.pop %v1728
  %v1730 = vmul.f32 %v1623, 1.442695
  %v1731 = vpow.pop %v1730
  %v1732 = vmul.f32 %v1624, 1.442695
  %v1733 = vpow.pop %v1732
  %v1734 = vmul.f32 %v1625, 1.442695
  %v1735 = vpow.pop %v1734
  %v1736 = vmul.f32 %v1626, 1.442695
  %v1737 = vpow.pop %v1736
  %v1738 = vmul.f32 %v1627, 1.442695
  %v1739 = vpow.pop %v1738
  %v1740 = vmul.f32 %v1628, 1.442695
  %v1741 = vpow.pop %v1740
  %v1742 = vmul.f32 %v1629, 1.442695
  %v1743 = vpow.pop %v1742
  %v1744 = vmul.f32 %v1630, 1.442695
  %v1745 = vpow.pop %v1744
  %v1746 = vmul.f32 %v1631, 1.442695
  %v1747 = vpow.pop %v1746
  %v1748 = vmul.f32 %v1632, 1.442695
  %v1749 = vpow.pop %v1748
  %v1750 = vmul.f32 %v1633, 1.442695
  %v1751 = vpow.pop %v1750
  %v1752 = vmul.f32 %v1634, 1.442695
  %v1753 = vpow.pop %v1752
  %v1754 = vmul.f32 %v1635, 1.442695
  %v1755 = vpow.pop %v1754
  %v1756 = vmul.f32 %v1636, 1.442695
  %v1757 = vpow.pop %v1756
  %v1758 = vmul.f32 %v1637, 1.442695
  %v1759 = vpow.pop %v1758
  %v1760 = vmul.f32 %v1638, 1.442695
  %v1761 = vpow.pop %v1760
  %v1762 = vmul.f32 %v1639, 1.442695
  %v1763 = vpow.pop %v1762
  %v1764 = vmul.f32 %v1640, 1.442695
  %v1765 = vpow.pop %v1764
  %v1766 = vmul.f32 %v1641, 1.442695
  %v1767 = vpow.pop %v1766
  %v1768 = vmul.f32 %v1642, 1.442695
  %v1769 = vpow.pop %v1768
  %v1770 = vmul.f32 %v1643, 1.442695
  %v1771 = vpow.pop %v1770
  %v1772 = vadd.f32 %v1645, 1.0
  %v1773 = vadd.f32 %v1647, 1.0
  %v1774 = vadd.f32 %v1649, 1.0
  %v1775 = vadd.f32 %v1651, 1.0
  %v1776 = vadd.f32 %v1653, 1.0
  %v1777 = vadd.f32 %v1655, 1.0
  %v1778 = vadd.f32 %v1657, 1.0
  %v1779 = vadd.f32 %v1659, 1.0
  %v1780 = vadd.f32 %v1661, 1.0
  %v1781 = vadd.f32 %v1663, 1.0
  %v1782 = vadd.f32 %v1665, 1.0
  %v1783 = vadd.f32 %v1667, 1.0
  %v1784 = vadd.f32 %v1669, 1.0
  %v1785 = vadd.f32 %v1671, 1.0
  %v1786 = vadd.f32 %v1673, 1.0
  %v1787 = vadd.f32 %v1675, 1.0
  %v1788 = vadd.f32 %v1677, 1.0
  %v1789 = vadd.f32 %v1679, 1.0
  %v1790 = vadd.f32 %v1681, 1.0
  %v1791 = vadd.f32 %v1683, 1.0
  %v1792 = vadd.f32 %v1685, 1.0
  %v1793 = vadd.f32 %v1687, 1.0
  %v1794 = vadd.f32 %v1689, 1.0
  %v1795 = vadd.f32 %v1691, 1.0
  %v1796 = vadd.f32 %v1693, 1.0
  %v1797 = vadd.f32 %v1695, 1.0
  %v1798 = vadd.f32 %v1697, 1.0
  %v1799 = vadd.f32 %v1699, 1.0
  %v1800 = vadd.f32 %v1701, 1.0
  %v1801 = vadd.f32 %v1703, 1.0
  %v1802 = vadd.f32 %v1705, 1.0
  %v1803 = vadd.f32 %v1707, 1.0
  %v1804 = vadd.f32 %v1709, 1.0
  %v1805 = vadd.f32 %v1711, 1.0
  %v1806 = vadd.f32 %v1713, 1.0
  %v1807 = vadd.f32 %v1715, 1.0
  %v1808 = vadd.f32 %v1717, 1.0
  %v1809 = vadd.f32 %v1719, 1.0
  %v1810 = vadd.f32 %v1721, 1.0
  %v1811 = vadd.f32 %v1723, 1.0
  %v1812 = vadd.f32 %v1725, 1.0
  %v1813 = vadd.f32 %v1727, 1.0
  %v1814 = vadd.f32 %v1729, 1.0
  %v1815 = vadd.f32 %v1731, 1.0
  %v1816 = vadd.f32 %v1733, 1.0
  %v1817 = vadd.f32 %v1735, 1.0
  %v1818 = vadd.f32 %v1737, 1.0
  %v1819 = vadd.f32 %v1739, 1.0
  %v1820 = vadd.f32 %v1741, 1.0
  %v1821 = vadd.f32 %v1743, 1.0
  %v1822 = vadd.f32 %v1745, 1.0
  %v1823 = vadd.f32 %v1747, 1.0
  %v1824 = vadd.f32 %v1749, 1.0
  %v1825 = vadd.f32 %v1751, 1.0
  %v1826 = vadd.f32 %v1753, 1.0
  %v1827 = vadd.f32 %v1755, 1.0
  %v1828 = vadd.f32 %v1757, 1.0
  %v1829 = vadd.f32 %v1759, 1.0
  %v1830 = vadd.f32 %v1761, 1.0
  %v1831 = vadd.f32 %v1763, 1.0
  %v1832 = vadd.f32 %v1765, 1.0
  %v1833 = vadd.f32 %v1767, 1.0
  %v1834 = vadd.f32 %v1769, 1.0
  %v1835 = vadd.f32 %v1771, 1.0
  %v1836 = vrcp.pop %v1772
  %v1837 = vmul.f32 1.0, %v1836
  %v1838 = vrcp.pop %v1773
  %v1839 = vmul.f32 1.0, %v1838
  %v1840 = vrcp.pop %v1774
  %v1841 = vmul.f32 1.0, %v1840
  %v1842 = vrcp.pop %v1775
  %v1843 = vmul.f32 1.0, %v1842
  %v1844 = vrcp.pop %v1776
  %v1845 = vmul.f32 1.0, %v1844
  %v1846 = vrcp.pop %v1777
  %v1847 = vmul.f32 1.0, %v1846
  %v1848 = vrcp.pop %v1778
  %v1849 = vmul.f32 1.0, %v1848
  %v1850 = vrcp.pop %v1779
  %v1851 = vmul.f32 1.0, %v1850
  %v1852 = vrcp.pop %v1780
  %v1853 = vmul.f32 1.0, %v1852
  %v1854 = vrcp.pop %v1781
  %v1855 = vmul.f32 1.0, %v1854
  %v1856 = vrcp.pop %v1782
  %v1857 = vmul.f32 1.0, %v1856
  %v1858 = vrcp.pop %v1783
  %v1859 = vmul.f32 1.0, %v1858
  %v1860 = vrcp.pop %v1784
  %v1861 = vmul.f32 1.0, %v1860
  %v1862 = vrcp.pop %v1785
  %v1863 = vmul.f32 1.0, %v1862
  %v1864 = vrcp.pop %v1786
  %v1865 = vmul.f32 1.0, %v1864
  %v1866 = vrcp.pop %v1787
  %v1867 = vmul.f32 1.0, %v1866
  %v1868 = vrcp.pop %v1788
  %v1869 = vmul.f32 1.0, %v1868
  %v1870 = vrcp.pop %v1789
  %v1871 = vmul.f32 1.0, %v1870
  %v1872 = vrcp.pop %v1790
  %v1873 = vmul.f32 1.0, %v1872
  %v1874 = vrcp.pop %v1791
  %v1875 = vmul.f32 1.0, %v1874
  %v1876 = vrcp.pop %v1792
  %v1877 = vmul.f32 1.0, %v1876
  %v1878 = vrcp.pop %v1793
  %v1879 = vmul.f32 1.0, %v1878
  %v1880 = vrcp.pop %v1794
  %v1881 = vmul.f32 1.0, %v1880
  %v1882 = vrcp.pop %v1795
  %v1883 = vmul.f32 1.0, %v1882
  %v1884 = vrcp.pop %v1796
  %v1885 = vmul.f32 1.0, %v1884
  %v1886 = vrcp.pop %v1797
  %v1887 = vmul.f32 1.0, %v1886
  %v1888 = vrcp.pop %v1798
  %v1889 = vmul.f32 1.0, %v1888
  %v1890 = vrcp.pop %v1799
  %v1891 = vmul.f32 1.0, %v1890
  %v1892 = vrcp.pop %v1800
  %v1893 = vmul.f32 1.0, %v1892
  %v1894 = vrcp.pop %v1801
  %v1895 = vmul.f32 1.0, %v1894
  %v1896 = vrcp.pop %v1802
  %v1897 = vmul.f32 1.0, %v1896
  %v1898 = vrcp.pop %v1803
  %v1899 = vmul.f32 1.0, %v1898
  %v1900 = vrcp.pop %v1804
  %v1901 = vmul.f32 1.0, %v1900
  %v1902 = vrcp.pop %v1805
  %v1903 = vmul.f32 1.0, %v1902
  %v1904 = vrcp.pop %v1806
  %v1905 = vmul.f32 1.0, %v1904
  %v1906 = vrcp.pop %v1807
  %v1907 = vmul.f32 1.0, %v1906
  %v1908 = vrcp.pop %v1808
  %v1909 = vmul.f32 1.0, %v1908
  %v1910 = vrcp.pop %v1809
  %v1911 = vmul.f32 1.0, %v1910
  %v1912 = vrcp.pop %v1810
  %v1913 = vmul.f32 1.0, %v1912
  %v1914 = vrcp.pop %v1811
  %v1915 = vmul.f32 1.0, %v1914
  %v1916 = vrcp.pop %v1812
  %v1917 = vmul.f32 1.0, %v1916
  %v1918 = vrcp.pop %v1813
  %v1919 = vmul.f32 1.0, %v1918
  %v1920 = vrcp.pop %v1814
  %v1921 = vmul.f32 1.0, %v1920
  %v1922 = vrcp.pop %v1815
  %v1923 = vmul.f32 1.0, %v1922
  %v1924 = vrcp.pop %v1816
  %v1925 = vmul.f32 1.0, %v1924
  %v1926 = vrcp.pop %v1817
  %v1927 = vmul.f32 1.0, %v1926
  %v1928 = vrcp.pop %v1818
  %v1929 = vmul.f32 1.0, %v1928
  %v1930 = vrcp.pop %v1819
  %v1931 = vmul.f32 1.0, %v1930
  %v1932 = vrcp.pop %v1820
  %v1933 = vmul.f32 1.0, %v1932
  %v1934 = vrcp.pop %v1821
  %v1935 = vmul.f32 1.0, %v1934
  %v1936 = vrcp.pop %v1822
  %v1937 = vmul.f32 1.0, %v1936
  %v1938 = vrcp.pop %v1823
  %v1939 = vmul.f32 1.0, %v1938
  %v1940 = vrcp.pop %v1824
  %v1941 = vmul.f32 1.0, %v1940
  %v1942 = vrcp.pop %v1825
  %v1943 = vmul.f32 1.0, %v1942
  %v1944 = vrcp.pop %v1826
  %v1945 = vmul.f32 1.0, %v1944
  %v1946 = vrcp.pop %v1827
  %v1947 = vmul.f32 1.0, %v1946
  %v1948 = vrcp.pop %v1828
  %v1949 = vmul.f32 1.0, %v1948
  %v1950 = vrcp.pop %v1829
  %v1951 = vmul.f32 1.0, %v1950
  %v1952 = vrcp.pop %v1830
  %v1953 = vmul.f32 1.0, %v1952
  %v1954 = vrcp.pop %v1831
  %v1955 = vmul.f32 1.0, %v1954
  %v1956 = vrcp.pop %v1832
  %v1957 = vmul.f32 1.0, %v1956
  %v1958 = vrcp.pop %v1833
  %v1959 = vmul.f32 1.0, %v1958
  %v1960 = vrcp.pop %v1834
  %v1961 = vmul.f32 1.0, %v1960
  %v1962 = vrcp.pop %v1835
  %v1963 = vmul.f32 1.0, %v1962
  %v1964 = vmul.f32 %v749, %v1837
  %v1965 = vmul.f32 %v754, %v1839
  %v1966 = vmul.f32 %v759, %v1841
  %v1967 = vmul.f32 %v764, %v1843
  %v1968 = vmul.f32 %v769, %v1845
  %v1969 = vmul.f32 %v774, %v1847
  %v1970 = vmul.f32 %v779, %v1849
  %v1971 = vmul.f32 %v784, %v1851
  %v1972 = vmul.f32 %v789, %v1853
  %v1973 = vmul.f32 %v794, %v1855
  %v1974 = vmul.f32 %v799, %v1857
  %v1975 = vmul.f32 %v804, %v1859
  %v1976 = vmul.f32 %v809, %v1861
  %v1977 = vmul.f32 %v814, %v1863
  %v1978 = vmul.f32 %v819, %v1865
  %v1979 = vmul.f32 %v824, %v1867
  %v1980 = vmul.f32 %v829, %v1869
  %v1981 = vmul.f32 %v834, %v1871
  %v1982 = vmul.f32 %v839, %v1873
  %v1983 = vmul.f32 %v844, %v1875
  %v1984 = vmul.f32 %v849, %v1877
  %v1985 = vmul.f32 %v854, %v1879
  %v1986 = vmul.f32 %v859, %v1881
  %v1987 = vmul.f32 %v864, %v1883
  %v1988 = vmul.f32 %v869, %v1885
  %v1989 = vmul.f32 %v874, %v1887
  %v1990 = vmul.f32 %v879, %v1889
  %v1991 = vmul.f32 %v884, %v1891
  %v1992 = vmul.f32 %v889, %v1893
  %v1993 = vmul.f32 %v894, %v1895
  %v1994 = vmul.f32 %v899, %v1897
  %v1995 = vmul.f32 %v904, %v1899
  %v1996 = vmul.f32 %v909, %v1901
  %v1997 = vmul.f32 %v914, %v1903
  %v1998 = vmul.f32 %v919, %v1905
  %v1999 = vmul.f32 %v924, %v1907
  %v2000 = vmul.f32 %v929, %v1909
  %v2001 = vmul.f32 %v934, %v1911
  %v2002 = vmul.f32 %v939, %v1913
  %v2003 = vmul.f32 %v944, %v1915
  %v2004 = vmul.f32 %v949, %v1917
  %v2005 = vmul.f32 %v954, %v1919
  %v2006 = vmul.f32 %v959, %v1921
  %v2007 = vmul.f32 %v964, %v1923
  %v2008 = vmul.f32 %v969, %v1925
  %v2009 = vmul.f32 %v974, %v1927
  %v2010 = vmul.f32 %v979, %v1929
  %v2011 = vmul.f32 %v984, %v1931
  %v2012 = vmul.f32 %v989, %v1933
  %v2013 = vmul.f32 %v994, %v1935
  %v2014 = vmul.f32 %v999, %v1937
  %v2015 = vmul.f32 %v1004, %v1939
  %v2016 = vmul.f32 %v1009, %v1941
  %v2017 = vmul.f32 %v1014, %v1943
  %v2018 = vmul.f32 %v1019, %v1945
  %v2019 = vmul.f32 %v1024, %v1947
  %v2020 = vmul.f32 %v1029, %v1949
  %v2021 = vmul.f32 %v1034, %v1951
  %v2022 = vmul.f32 %v1039, %v1953
  %v2023 = vmul.f32 %v1044, %v1955
  %v2024 = vmul.f32 %v1049, %v1957
  %v2025 = vmul.f32 %v1054, %v1959
  %v2026 = vmul.f32 %v1059, %v1961
  %v2027 = vmul.f32 %v1064, %v1963
  %2028 = vst.msk [vmem:[%s6] sm:$0xff] %vm1515, %v1964
  %2029 = vst.msk [vmem:[%s6 + $0x8] sm:$0xff] %vm1515, %v1965
  %2030 = vst.msk [vmem:[%s6 + $0x10] sm:$0xff] %vm1515, %v1966
  %2031 = vst.msk [vmem:[%s6 + $0x18] sm:$0xff] %vm1515, %v1967
  %2032 = vst.msk [vmem:[%s6 + $0x20] sm:$0xff] %vm1515, %v1968
  %2033 = vst.msk [vmem:[%s6 + $0x28] sm:$0xff] %vm1515, %v1969
  %2034 = vst.msk [vmem:[%s6 + $0x30] sm:$0xff] %vm1515, %v1970
  %2035 = vst.msk [vmem:[%s6 + $0x38] sm:$0xff] %vm1515, %v1971
  %2036 = vst.msk [vmem:[%s6 + $0x40] sm:$0xff] %vm1515, %v1972
  %2037 = vst.msk [vmem:[%s6 + $0x48] sm:$0xff] %vm1515, %v1973
  %2038 = vst.msk [vmem:[%s6 + $0x50] sm:$0xff] %vm1515, %v1974
  %2039 = vst.msk [vmem:[%s6 + $0x58] sm:$0xff] %vm1515, %v1975
  %2040 = vst.msk [vmem:[%s6 + $0x60] sm:$0xff] %vm1515, %v1976
  %2041 = vst.msk [vmem:[%s6 + $0x68] sm:$0xff] %vm1515, %v1977
  %2042 = vst.msk [vmem:[%s6 + $0x70] sm:$0xff] %vm1515, %v1978
  %2043 = vst.msk [vmem:[%s6 + $0x78] sm:$0xff] %vm1515, %v1979
  %2044 = vst.msk [vmem:[%s6 + $0x80] sm:$0xff] %vm1515, %v1980
  %2045 = vst.msk [vmem:[%s6 + $0x88] sm:$0xff] %vm1515, %v1981
  %2046 = vst.msk [vmem:[%s6 + $0x90] sm:$0xff] %vm1515, %v1982
  %2047 = vst.msk [vmem:[%s6 + $0x98] sm:$0xff] %vm1515, %v1983
  %2048 = vst.msk [vmem:[%s6 + $0xa0] sm:$0xff] %vm1515, %v1984
  %2049 = vst.msk [vmem:[%s6 + $0xa8] sm:$0xff] %vm1515, %v1985
  %2050 = vst.msk [vmem:[%s6 + $0xb0] sm:$0xff] %vm1515, %v1986
  %2051 = vst.msk [vmem:[%s6 + $0xb8] sm:$0xff] %vm1515, %v1987
  %2052 = vst.msk [vmem:[%s6 + $0xc0] sm:$0xff] %vm1515, %v1988
  %2053 = vst.msk [vmem:[%s6 + $0xc8] sm:$0xff] %vm1515, %v1989
  %2054 = vst.msk [vmem:[%s6 + $0xd0] sm:$0xff] %vm1515, %v1990
  %2055 = vst.msk [vmem:[%s6 + $0xd8] sm:$0xff] %vm1515, %v1991
  %2056 = vst.msk [vmem:[%s6 + $0xe0] sm:$0xff] %vm1515, %v1992
  %2057 = vst.msk [vmem:[%s6 + $0xe8] sm:$0xff] %vm1515, %v1993
  %2058 = vst.msk [vmem:[%s6 + $0xf0] sm:$0xff] %vm1515, %v1994
  %2059 = vst.msk [vmem:[%s6 + $0xf8] sm:$0xff] %vm1515, %v1995
  %2060 = vst.msk [vmem:[%s6 + $0x100] sm:$0xff] %vm1515, %v1996
  %2061 = vst.msk [vmem:[%s6 + $0x108] sm:$0xff] %vm1515, %v1997
  %2062 = vst.msk [vmem:[%s6 + $0x110] sm:$0xff] %vm1515, %v1998
  %2063 = vst.msk [vmem:[%s6 + $0x118] sm:$0xff] %vm1515, %v1999
  %2064 = vst.msk [vmem:[%s6 + $0x120] sm:$0xff] %vm1515, %v2000
  %2065 = vst.msk [vmem:[%s6 + $0x128] sm:$0xff] %vm1515, %v2001
  %2066 = vst.msk [vmem:[%s6 + $0x130] sm:$0xff] %vm1515, %v2002
  %2067 = vst.msk [vmem:[%s6 + $0x138] sm:$0xff] %vm1515, %v2003
  %2068 = vst.msk [vmem:[%s6 + $0x140] sm:$0xff] %vm1515, %v2004
  %2069 = vst.msk [vmem:[%s6 + $0x148] sm:$0xff] %vm1515, %v2005
  %2070 = vst.msk [vmem:[%s6 + $0x150] sm:$0xff] %vm1515, %v2006
  %2071 = vst.msk [vmem:[%s6 + $0x158] sm:$0xff] %vm1515, %v2007
  %2072 = vst.msk [vmem:[%s6 + $0x160] sm:$0xff] %vm1515, %v2008
  %2073 = vst.msk [vmem:[%s6 + $0x168] sm:$0xff] %vm1515, %v2009
  %2074 = vst.msk [vmem:[%s6 + $0x170] sm:$0xff] %vm1515, %v2010
  %2075 = vst.msk [vmem:[%s6 + $0x178] sm:$0xff] %vm1515, %v2011
  %2076 = vst.msk [vmem:[%s6 + $0x180] sm:$0xff] %vm1515, %v2012
  %2077 = vst.msk [vmem:[%s6 + $0x188] sm:$0xff] %vm1515, %v2013
  %2078 = vst.msk [vmem:[%s6 + $0x190] sm:$0xff] %vm1515, %v2014
  %2079 = vst.msk [vmem:[%s6 + $0x198] sm:$0xff] %vm1515, %v2015
  %2080 = vst.msk [vmem:[%s6 + $0x1a0] sm:$0xff] %vm1515, %v2016
  %2081 = vst.msk [vmem:[%s6 + $0x1a8] sm:$0xff] %vm1515, %v2017
  %2082 = vst.msk [vmem:[%s6 + $0x1b0] sm:$0xff] %vm1515, %v2018
  %2083 = vst.msk [vmem:[%s6 + $0x1b8] sm:$0xff] %vm1515, %v2019
  %2084 = vst.msk [vmem:[%s6 + $0x1c0] sm:$0xff] %vm1515, %v2020
  %2085 = vst.msk [vmem:[%s6 + $0x1c8] sm:$0xff] %vm1515, %v2021
  %2086 = vst.msk [vmem:[%s6 + $0x1d0] sm:$0xff] %vm1515, %v2022
  %2087 = vst.msk [vmem:[%s6 + $0x1d8] sm:$0xff] %vm1515, %v2023
  %2088 = vst.msk [vmem:[%s6 + $0x1e0] sm:$0xff] %vm1515, %v2024
  %2089 = vst.msk [vmem:[%s6 + $0x1e8] sm:$0xff] %vm1515, %v2025
  %2090 = vst.msk [vmem:[%s6 + $0x1f0] sm:$0xff] %vm1515, %v2026
  %2091 = vst.msk [vmem:[%s6 + $0x1f8] sm:$0xff] %vm1515, %v2027
  // Predicated region
  $region22: #{tpu_custom_call.1} parent=0 // pred_check
    _
  $region23: #{tpu_custom_call.1} parent=0 // pred_check_branch
    %2093 = sbr.rel (0) target = $region25
  $region24: #{tpu_custom_call.1} parent=0 // pred_region
    _
  $region25: #{tpu_custom_call.1} parent=0 // pred_fallthru
    _
  // Predicated region
  $region26: #{tpu_custom_call.1} parent=0 // pred_check
    _
  $region27: #{tpu_custom_call.1} parent=0 // pred_check_branch
    %2095 = sbr.rel (0) target = $region29
  $region28: #{tpu_custom_call.1} parent=0 // pred_region
    _
  $region29: #{tpu_custom_call.1} parent=0 // pred_fallthru
    _
  // Predicated region
  $region30: #{tpu_custom_call.1} parent=0 // pred_check
    _
  $region31: #{tpu_custom_call.1} parent=0 // pred_check_branch
    %2097 = sbr.rel (0) target = $region33
  $region32: #{tpu_custom_call.1} parent=0 // pred_region
    _
  $region33: #{tpu_custom_call.1} parent=0 // pred_fallthru
    _
  // Predicated region
  $region34: #{tpu_custom_call.1} parent=0 // pred_check
    _
  $region35: #{tpu_custom_call.1} parent=0 // pred_check_branch
    %2099 = sbr.rel (0) target = $region37
  $region36: #{tpu_custom_call.1} parent=0 // pred_region
    _
  $region37: #{tpu_custom_call.1} parent=0 // pred_fallthru
    _

</llo_original>
